<compile_context>
chip_gen: v5e
topology: v5e:2x2
jax: 0.10.0
libtpu: 0.0.40
codegen_flags: <defaults>
</compile_context>

<pallas_src>
import functools

import jax
import jax.numpy as jnp
from jax.experimental import pallas as pl
from jax.experimental.pallas import tpu as pltpu


def _fused_vit_attention_kernel(x_ref, wqkv_ref, wproj_ref, bproj_ref, out_ref,
                                ocat_ref, *, num_heads, n_valid):
    # x_ref:     (1, N_pad, C)   current batch element
    # wqkv_ref:  (C, 3C)         qkv weight (scale pre-folded into q cols), VMEM-resident
    # wproj_ref: (C, C)          output projection weight, VMEM-resident
    # bproj_ref: (1, C)          output projection bias
    # out_ref:   (1, N_pad, C)
    # ocat_ref:  (N_pad, C)      VMEM scratch holding the concatenated per-head outputs
    n_pad = x_ref.shape[1]
    c = x_ref.shape[2]
    hd = c // num_heads

    x = x_ref[0]                                                   # (N_pad, C)

    # ---- qkv projection: ONE lane-dense MXU matmul, f32 accumulation ----
    qkv = jnp.dot(x, wqkv_ref[...], preferred_element_type=jnp.float32)
    qkv = qkv.astype(x.dtype)                                      # (N_pad, 3C)

    need_mask = n_valid < n_pad
    if need_mask:
        # Padded key columns must not receive probability mass.
        key_valid = jax.lax.broadcasted_iota(jnp.int32, (1, n_pad), 1) < n_valid

    # ---- per-head attention (all heads in this single grid step) ----
    for h in range(num_heads):                                     # static unroll, H small
        q = qkv[:, h * hd:(h + 1) * hd]                            # scale folded into Wq
        k = qkv[:, c + h * hd: c + (h + 1) * hd]
        v = qkv[:, 2 * c + h * hd: 2 * c + (h + 1) * hd]

        # scores (N, N): q @ k^T with f32 accumulation on the MXU (no materialized .T)
        s = jax.lax.dot_general(q, k, (((1,), (1,)), ((), ())),
                                preferred_element_type=jnp.float32)
        if need_mask:
            s = jnp.where(key_valid, s, jnp.float32(-1e30))

        m = jnp.max(s, axis=-1, keepdims=True)
        p = jnp.exp(s - m)                                         # f32 softmax numerator
        l = jnp.sum(p, axis=-1, keepdims=True)

        o = jnp.dot(p.astype(v.dtype), v,
                    preferred_element_type=jnp.float32)            # (N, hd)
        # Normalize the small (N, hd) head output; reciprocal on the EUP slot.
        o = o * pl.reciprocal(l, approx=True)

        # Concatenate heads along the channel (lane) axis in VMEM scratch.
        ocat_ref[:, h * hd:(h + 1) * hd] = o.astype(ocat_ref.dtype)

    # ---- output projection: ONE full-contraction-depth (N, C) @ (C, C) matmul ----
    out = jnp.dot(ocat_ref[...], wproj_ref[...],
                  preferred_element_type=jnp.float32)
    out = out + bproj_ref[...].astype(jnp.float32)
    out_ref[0] = out.astype(out_ref.dtype)


def vit_attention(x, w_qkv_t, w_proj_t, b_proj, *, num_heads, qk_scale=None):
    """x: (B, N, C). w_qkv_t: (C, 3C). w_proj_t: (C, C). b_proj: (C,)."""
    B, N, C = x.shape
    assert C % num_heads == 0, "dim must be divisible by num_heads"
    hd = C // num_heads
    scale = float(qk_scale) if qk_scale is not None else float(hd) ** -0.5
    itemsize = jnp.dtype(x.dtype).itemsize

    # Fold the softmax scale into the q-columns of W_qkv (one-time wrapper-side op on the
    # weight; mathematically identical to scaling q@k^T).
    w_qkv_scaled = jnp.concatenate([w_qkv_t[:, :C] * scale, w_qkv_t[:, C:]], axis=1)
    b_proj2d = b_proj.reshape(1, C)

    # Pad the token dimension to a sublane multiple so all tiles are aligned; padded key
    # columns are masked inside the kernel, padded rows are sliced off afterwards.
    n_pad = ((N + 7) // 8) * 8
    x_in = jnp.pad(x, ((0, 0), (0, n_pad - N), (0, 0))) if n_pad != N else x

    kernel = functools.partial(_fused_vit_attention_kernel,
                               num_heads=num_heads, n_valid=N)

    # TODO(synk): for ViT-L/H with f32 weights on v7x (64 MiB VMEM), tile the 3C columns
    # of W_qkv (or cast weights to bf16) instead of keeping the full (C, 3C) block resident.
    out = pl.pallas_call(
        kernel,
        out_shape=jax.ShapeDtypeStruct((B, n_pad, C), x.dtype),
        grid=(B,),
        in_specs=[
            pl.BlockSpec((1, n_pad, C), lambda b: (b, 0, 0)),   # x (per-batch tile)
            pl.BlockSpec((C, 3 * C), lambda b: (0, 0)),         # W_qkv (VMEM-resident)
            pl.BlockSpec((C, C), lambda b: (0, 0)),             # W_proj (VMEM-resident)
            pl.BlockSpec((1, C), lambda b: (0, 0)),             # bias   (VMEM-resident)
        ],
        out_specs=pl.BlockSpec((1, n_pad, C), lambda b: (b, 0, 0)),
        scratch_shapes=[pltpu.VMEM((n_pad, C), x.dtype)],
        compiler_params=pltpu.CompilerParams(
            dimension_semantics=("parallel",),          # batch axis → megacore on v7x
            vmem_limit_bytes=48 * 1024 * 1024),
        cost_estimate=pl.CostEstimate(
            flops=B * (2 * n_pad * C * 3 * C
                       + 4 * num_heads * n_pad * n_pad * hd
                       + 2 * n_pad * C * C),
            transcendentals=B * num_heads * n_pad * n_pad,
            bytes_accessed=itemsize * (2 * B * n_pad * C + 4 * C * C + C)),
    )(x_in, w_qkv_scaled, w_proj_t, b_proj2d)

    if n_pad != N:
        out = out[:, :N, :]
    return out


def vit_attention_ref(x, w_qkv_t, w_proj_t, b_proj, *, num_heads):
    """Pure-JAX reference mirroring the PyTorch forward (dropout = identity)."""
    B, N, C = x.shape
    hd = C // num_heads
    scale = float(hd) ** -0.5
    qkv = (x @ w_qkv_t).reshape(B, N, 3, num_heads, hd).transpose(2, 0, 3, 1, 4)
    q, k, v = qkv[0], qkv[1], qkv[2]                            # (B, H, N, hd)
    attn = (q @ jnp.swapaxes(k, -2, -1)) * scale
    attn = jax.nn.softmax(attn, axis=-1)
    o = (attn @ v).transpose(0, 2, 1, 3).reshape(B, N, C)
    return o @ w_proj_t + b_proj


if __name__ == "__main__":
    B, N, C = 2, 16, 64
    num_heads = 8                      # module default; head_dim = 8

    key = jax.random.PRNGKey(0)
    kx, kq, kp, kb = jax.random.split(key, 4)

    x = jax.random.normal(kx, (B, N, C), dtype=jnp.float32)
    # nn.Linear(dim, 3*dim, bias=False): weight (3C, C) -> pass transpose (C, 3C)
    w_qkv_t = (jax.random.normal(kq, (3 * C, C), dtype=jnp.float32) * 0.05).T
    # nn.Linear(dim, dim): weight (C, C) -> pass transpose; bias (C,)
    w_proj_t = (jax.random.normal(kp, (C, C), dtype=jnp.float32) * 0.05).T
    b_proj = jax.random.normal(kb, (C,), dtype=jnp.float32) * 0.05

    out = vit_attention(x, w_qkv_t, w_proj_t, b_proj, num_heads=num_heads)
    out = jax.block_until_ready(out)

    ref = vit_attention_ref(x, w_qkv_t, w_proj_t, b_proj, num_heads=num_heads)
    assert out.shape == ref.shape
    # Tolerance accommodates pl.reciprocal(approx=True) in the softmax normalization;
    # structural errors would be orders of magnitude larger.
    max_err = float(jnp.max(jnp.abs(out - ref)))
    assert max_err < 5e-3, f"mismatch vs JAX reference (max abs err {max_err})"

    print("KERNEL_OK")
</pallas_src>

<mosaic_0001>
module attributes {stable_mosaic.version = 11 : i64} {
  func.func @_fused_vit_attention_kernel(%arg0: i32, %arg1: memref<1x16x64xf32, #tpu.memory_space<vmem>>, %arg2: memref<64x192xf32, #tpu.memory_space<vmem>>, %arg3: memref<64x64xf32, #tpu.memory_space<vmem>>, %arg4: memref<1x64xf32, #tpu.memory_space<vmem>>, %arg5: memref<1x16x64xf32, #tpu.memory_space<vmem>>, %arg6: memref<16x64xf32, #tpu.memory_space<vmem>>) attributes {dimension_semantics = [#tpu.dimension_semantics<parallel>], iteration_bounds = array<i64: 2>, scalar_prefetch = 0 : i64, scratch_operands = 1 : i64, tpu.core_type = #tpu.core_type<tc>, window_params = [{transform_indices = @transform_0, window_bounds = array<i64: 1, 16, 64>}, {pipeline_mode = #tpu.pipeline_mode<synchronous>, transform_indices = @transform_1, window_bounds = array<i64: 64, 192>}, {pipeline_mode = #tpu.pipeline_mode<synchronous>, transform_indices = @transform_2, window_bounds = array<i64: 64, 64>}, {pipeline_mode = #tpu.pipeline_mode<synchronous>, transform_indices = @transform_3, window_bounds = array<i64: 1, 64>}, {transform_indices = @transform_4, window_bounds = array<i64: 1, 16, 64>}]} {
    %c0 = arith.constant 0 : index
    %c0_0 = arith.constant 0 : index
    %c0_1 = arith.constant 0 : index
    %0 = vector.load %arg1[%c0, %c0_0, %c0_1] : memref<1x16x64xf32, #tpu.memory_space<vmem>>, vector<1x16x64xf32>
    %1 = vector.shape_cast %0 : vector<1x16x64xf32> to vector<16x64xf32>
    %c0_2 = arith.constant 0 : index
    %c0_3 = arith.constant 0 : index
    %2 = vector.load %arg2[%c0_2, %c0_3] : memref<64x192xf32, #tpu.memory_space<vmem>>, vector<64x192xf32>
    %cst = arith.constant dense<0.000000e+00> : vector<16x192xf32>
    %3 = tpu.matmul %1, %2, %cst {dimension_numbers = #tpu.dot_dimension_numbers<[1], [0], [0], [1], [0, 0, 1, 1], [], []>} : vector<16x64xf32>, vector<64x192xf32>, vector<16x192xf32> -> vector<16x192xf32>
    %4 = vector.extract_strided_slice %3 {offsets = [0, 0], sizes = [16, 8], strides = [1, 1]} : vector<16x192xf32> to vector<16x8xf32>
    %5 = vector.extract_strided_slice %3 {offsets = [0, 64], sizes = [16, 8], strides = [1, 1]} : vector<16x192xf32> to vector<16x8xf32>
    %6 = vector.extract_strided_slice %3 {offsets = [0, 128], sizes = [16, 8], strides = [1, 1]} : vector<16x192xf32> to vector<16x8xf32>
    %cst_4 = arith.constant dense<0.000000e+00> : vector<16x16xf32>
    %7 = tpu.matmul %4, %5, %cst_4 {dimension_numbers = #tpu.dot_dimension_numbers<[1], [1], [0], [0], [0, 0, 1, 0], [], []>} : vector<16x8xf32>, vector<16x8xf32>, vector<16x16xf32> -> vector<16x16xf32>
    %cst_5 = arith.constant dense<0xFF800000> : vector<16xf32>
    %8 = vector.multi_reduction <maximumf>, %7, %cst_5 [1] : vector<16x16xf32> to vector<16xf32>
    %9 = vector.shape_cast %8 : vector<16xf32> to vector<16x1xf32>
    %10 = vector.broadcast %9 : vector<16x1xf32> to vector<16x16xf32>
    %11 = arith.subf %7, %10 : vector<16x16xf32>
    %12 = math.exp %11 : vector<16x16xf32>
    %cst_6 = arith.constant dense<0.000000e+00> : vector<16xf32>
    %13 = vector.multi_reduction <add>, %12, %cst_6 [1] : vector<16x16xf32> to vector<16xf32>
    %14 = vector.shape_cast %13 : vector<16xf32> to vector<16x1xf32>
    %cst_7 = arith.constant dense<0.000000e+00> : vector<16x8xf32>
    %15 = tpu.matmul %12, %6, %cst_7 {dimension_numbers = #tpu.dot_dimension_numbers<[1], [0], [0], [1], [0, 0, 1, 1], [], []>} : vector<16x16xf32>, vector<16x8xf32>, vector<16x8xf32> -> vector<16x8xf32>
    %16 = tpu.reciprocal %14 {approx = true} : vector<16x1xf32> -> vector<16x1xf32>
    %17 = vector.broadcast %16 : vector<16x1xf32> to vector<16x8xf32>
    %18 = arith.mulf %15, %17 : vector<16x8xf32>
    %c0_8 = arith.constant 0 : index
    %c0_9 = arith.constant 0 : index
    %19 = vector.load %arg6[%c0_8, %c0_9] : memref<16x64xf32, #tpu.memory_space<vmem>>, vector<16x8xf32>
    tpu.vector_store %arg6[%c0_8, %c0_9], %18 {strides = array<i32>} : memref<16x64xf32, #tpu.memory_space<vmem>>, vector<16x8xf32>,
    %20 = vector.extract_strided_slice %3 {offsets = [0, 8], sizes = [16, 8], strides = [1, 1]} : vector<16x192xf32> to vector<16x8xf32>
    %21 = vector.extract_strided_slice %3 {offsets = [0, 72], sizes = [16, 8], strides = [1, 1]} : vector<16x192xf32> to vector<16x8xf32>
    %22 = vector.extract_strided_slice %3 {offsets = [0, 136], sizes = [16, 8], strides = [1, 1]} : vector<16x192xf32> to vector<16x8xf32>
    %cst_10 = arith.constant dense<0.000000e+00> : vector<16x16xf32>
    %23 = tpu.matmul %20, %21, %cst_10 {dimension_numbers = #tpu.dot_dimension_numbers<[1], [1], [0], [0], [0, 0, 1, 0], [], []>} : vector<16x8xf32>, vector<16x8xf32>, vector<16x16xf32> -> vector<16x16xf32>
    %cst_11 = arith.constant dense<0xFF800000> : vector<16xf32>
    %24 = vector.multi_reduction <maximumf>, %23, %cst_11 [1] : vector<16x16xf32> to vector<16xf32>
    %25 = vector.shape_cast %24 : vector<16xf32> to vector<16x1xf32>
    %26 = vector.broadcast %25 : vector<16x1xf32> to vector<16x16xf32>
    %27 = arith.subf %23, %26 : vector<16x16xf32>
    %28 = math.exp %27 : vector<16x16xf32>
    %cst_12 = arith.constant dense<0.000000e+00> : vector<16xf32>
    %29 = vector.multi_reduction <add>, %28, %cst_12 [1] : vector<16x16xf32> to vector<16xf32>
    %30 = vector.shape_cast %29 : vector<16xf32> to vector<16x1xf32>
    %cst_13 = arith.constant dense<0.000000e+00> : vector<16x8xf32>
    %31 = tpu.matmul %28, %22, %cst_13 {dimension_numbers = #tpu.dot_dimension_numbers<[1], [0], [0], [1], [0, 0, 1, 1], [], []>} : vector<16x16xf32>, vector<16x8xf32>, vector<16x8xf32> -> vector<16x8xf32>
    %32 = tpu.reciprocal %30 {approx = true} : vector<16x1xf32> -> vector<16x1xf32>
    %33 = vector.broadcast %32 : vector<16x1xf32> to vector<16x8xf32>
    %34 = arith.mulf %31, %33 : vector<16x8xf32>
    %c0_14 = arith.constant 0 : index
    %c8 = arith.constant 8 : index
    %35 = vector.load %arg6[%c0_14, %c8] : memref<16x64xf32, #tpu.memory_space<vmem>>, vector<16x8xf32>
    tpu.vector_store %arg6[%c0_14, %c8], %34 {strides = array<i32>} : memref<16x64xf32, #tpu.memory_space<vmem>>, vector<16x8xf32>,
    %36 = vector.extract_strided_slice %3 {offsets = [0, 16], sizes = [16, 8], strides = [1, 1]} : vector<16x192xf32> to vector<16x8xf32>
    %37 = vector.extract_strided_slice %3 {offsets = [0, 80], sizes = [16, 8], strides = [1, 1]} : vector<16x192xf32> to vector<16x8xf32>
    %38 = vector.extract_strided_slice %3 {offsets = [0, 144], sizes = [16, 8], strides = [1, 1]} : vector<16x192xf32> to vector<16x8xf32>
    %cst_15 = arith.constant dense<0.000000e+00> : vector<16x16xf32>
    %39 = tpu.matmul %36, %37, %cst_15 {dimension_numbers = #tpu.dot_dimension_numbers<[1], [1], [0], [0], [0, 0, 1, 0], [], []>} : vector<16x8xf32>, vector<16x8xf32>, vector<16x16xf32> -> vector<16x16xf32>
    %cst_16 = arith.constant dense<0xFF800000> : vector<16xf32>
    %40 = vector.multi_reduction <maximumf>, %39, %cst_16 [1] : vector<16x16xf32> to vector<16xf32>
    %41 = vector.shape_cast %40 : vector<16xf32> to vector<16x1xf32>
    %42 = vector.broadcast %41 : vector<16x1xf32> to vector<16x16xf32>
    %43 = arith.subf %39, %42 : vector<16x16xf32>
    %44 = math.exp %43 : vector<16x16xf32>
    %cst_17 = arith.constant dense<0.000000e+00> : vector<16xf32>
    %45 = vector.multi_reduction <add>, %44, %cst_17 [1] : vector<16x16xf32> to vector<16xf32>
    %46 = vector.shape_cast %45 : vector<16xf32> to vector<16x1xf32>
    %cst_18 = arith.constant dense<0.000000e+00> : vector<16x8xf32>
    %47 = tpu.matmul %44, %38, %cst_18 {dimension_numbers = #tpu.dot_dimension_numbers<[1], [0], [0], [1], [0, 0, 1, 1], [], []>} : vector<16x16xf32>, vector<16x8xf32>, vector<16x8xf32> -> vector<16x8xf32>
    %48 = tpu.reciprocal %46 {approx = true} : vector<16x1xf32> -> vector<16x1xf32>
    %49 = vector.broadcast %48 : vector<16x1xf32> to vector<16x8xf32>
    %50 = arith.mulf %47, %49 : vector<16x8xf32>
    %c0_19 = arith.constant 0 : index
    %c16 = arith.constant 16 : index
    %51 = vector.load %arg6[%c0_19, %c16] : memref<16x64xf32, #tpu.memory_space<vmem>>, vector<16x8xf32>
    tpu.vector_store %arg6[%c0_19, %c16], %50 {strides = array<i32>} : memref<16x64xf32, #tpu.memory_space<vmem>>, vector<16x8xf32>,
    %52 = vector.extract_strided_slice %3 {offsets = [0, 24], sizes = [16, 8], strides = [1, 1]} : vector<16x192xf32> to vector<16x8xf32>
    %53 = vector.extract_strided_slice %3 {offsets = [0, 88], sizes = [16, 8], strides = [1, 1]} : vector<16x192xf32> to vector<16x8xf32>
    %54 = vector.extract_strided_slice %3 {offsets = [0, 152], sizes = [16, 8], strides = [1, 1]} : vector<16x192xf32> to vector<16x8xf32>
    %cst_20 = arith.constant dense<0.000000e+00> : vector<16x16xf32>
    %55 = tpu.matmul %52, %53, %cst_20 {dimension_numbers = #tpu.dot_dimension_numbers<[1], [1], [0], [0], [0, 0, 1, 0], [], []>} : vector<16x8xf32>, vector<16x8xf32>, vector<16x16xf32> -> vector<16x16xf32>
    %cst_21 = arith.constant dense<0xFF800000> : vector<16xf32>
    %56 = vector.multi_reduction <maximumf>, %55, %cst_21 [1] : vector<16x16xf32> to vector<16xf32>
    %57 = vector.shape_cast %56 : vector<16xf32> to vector<16x1xf32>
    %58 = vector.broadcast %57 : vector<16x1xf32> to vector<16x16xf32>
    %59 = arith.subf %55, %58 : vector<16x16xf32>
    %60 = math.exp %59 : vector<16x16xf32>
    %cst_22 = arith.constant dense<0.000000e+00> : vector<16xf32>
    %61 = vector.multi_reduction <add>, %60, %cst_22 [1] : vector<16x16xf32> to vector<16xf32>
    %62 = vector.shape_cast %61 : vector<16xf32> to vector<16x1xf32>
    %cst_23 = arith.constant dense<0.000000e+00> : vector<16x8xf32>
    %63 = tpu.matmul %60, %54, %cst_23 {dimension_numbers = #tpu.dot_dimension_numbers<[1], [0], [0], [1], [0, 0, 1, 1], [], []>} : vector<16x16xf32>, vector<16x8xf32>, vector<16x8xf32> -> vector<16x8xf32>
    %64 = tpu.reciprocal %62 {approx = true} : vector<16x1xf32> -> vector<16x1xf32>
    %65 = vector.broadcast %64 : vector<16x1xf32> to vector<16x8xf32>
    %66 = arith.mulf %63, %65 : vector<16x8xf32>
    %c0_24 = arith.constant 0 : index
    %c24 = arith.constant 24 : index
    %67 = vector.load %arg6[%c0_24, %c24] : memref<16x64xf32, #tpu.memory_space<vmem>>, vector<16x8xf32>
    tpu.vector_store %arg6[%c0_24, %c24], %66 {strides = array<i32>} : memref<16x64xf32, #tpu.memory_space<vmem>>, vector<16x8xf32>,
    %68 = vector.extract_strided_slice %3 {offsets = [0, 32], sizes = [16, 8], strides = [1, 1]} : vector<16x192xf32> to vector<16x8xf32>
    %69 = vector.extract_strided_slice %3 {offsets = [0, 96], sizes = [16, 8], strides = [1, 1]} : vector<16x192xf32> to vector<16x8xf32>
    %70 = vector.extract_strided_slice %3 {offsets = [0, 160], sizes = [16, 8], strides = [1, 1]} : vector<16x192xf32> to vector<16x8xf32>
    %cst_25 = arith.constant dense<0.000000e+00> : vector<16x16xf32>
    %71 = tpu.matmul %68, %69, %cst_25 {dimension_numbers = #tpu.dot_dimension_numbers<[1], [1], [0], [0], [0, 0, 1, 0], [], []>} : vector<16x8xf32>, vector<16x8xf32>, vector<16x16xf32> -> vector<16x16xf32>
    %cst_26 = arith.constant dense<0xFF800000> : vector<16xf32>
    %72 = vector.multi_reduction <maximumf>, %71, %cst_26 [1] : vector<16x16xf32> to vector<16xf32>
    %73 = vector.shape_cast %72 : vector<16xf32> to vector<16x1xf32>
    %74 = vector.broadcast %73 : vector<16x1xf32> to vector<16x16xf32>
    %75 = arith.subf %71, %74 : vector<16x16xf32>
    %76 = math.exp %75 : vector<16x16xf32>
    %cst_27 = arith.constant dense<0.000000e+00> : vector<16xf32>
    %77 = vector.multi_reduction <add>, %76, %cst_27 [1] : vector<16x16xf32> to vector<16xf32>
    %78 = vector.shape_cast %77 : vector<16xf32> to vector<16x1xf32>
    %cst_28 = arith.constant dense<0.000000e+00> : vector<16x8xf32>
    %79 = tpu.matmul %76, %70, %cst_28 {dimension_numbers = #tpu.dot_dimension_numbers<[1], [0], [0], [1], [0, 0, 1, 1], [], []>} : vector<16x16xf32>, vector<16x8xf32>, vector<16x8xf32> -> vector<16x8xf32>
    %80 = tpu.reciprocal %78 {approx = true} : vector<16x1xf32> -> vector<16x1xf32>
    %81 = vector.broadcast %80 : vector<16x1xf32> to vector<16x8xf32>
    %82 = arith.mulf %79, %81 : vector<16x8xf32>
    %c0_29 = arith.constant 0 : index
    %c32 = arith.constant 32 : index
    %83 = vector.load %arg6[%c0_29, %c32] : memref<16x64xf32, #tpu.memory_space<vmem>>, vector<16x8xf32>
    tpu.vector_store %arg6[%c0_29, %c32], %82 {strides = array<i32>} : memref<16x64xf32, #tpu.memory_space<vmem>>, vector<16x8xf32>,
    %84 = vector.extract_strided_slice %3 {offsets = [0, 40], sizes = [16, 8], strides = [1, 1]} : vector<16x192xf32> to vector<16x8xf32>
    %85 = vector.extract_strided_slice %3 {offsets = [0, 104], sizes = [16, 8], strides = [1, 1]} : vector<16x192xf32> to vector<16x8xf32>
    %86 = vector.extract_strided_slice %3 {offsets = [0, 168], sizes = [16, 8], strides = [1, 1]} : vector<16x192xf32> to vector<16x8xf32>
    %cst_30 = arith.constant dense<0.000000e+00> : vector<16x16xf32>
    %87 = tpu.matmul %84, %85, %cst_30 {dimension_numbers = #tpu.dot_dimension_numbers<[1], [1], [0], [0], [0, 0, 1, 0], [], []>} : vector<16x8xf32>, vector<16x8xf32>, vector<16x16xf32> -> vector<16x16xf32>
    %cst_31 = arith.constant dense<0xFF800000> : vector<16xf32>
    %88 = vector.multi_reduction <maximumf>, %87, %cst_31 [1] : vector<16x16xf32> to vector<16xf32>
    %89 = vector.shape_cast %88 : vector<16xf32> to vector<16x1xf32>
    %90 = vector.broadcast %89 : vector<16x1xf32> to vector<16x16xf32>
    %91 = arith.subf %87, %90 : vector<16x16xf32>
    %92 = math.exp %91 : vector<16x16xf32>
    %cst_32 = arith.constant dense<0.000000e+00> : vector<16xf32>
    %93 = vector.multi_reduction <add>, %92, %cst_32 [1] : vector<16x16xf32> to vector<16xf32>
    %94 = vector.shape_cast %93 : vector<16xf32> to vector<16x1xf32>
    %cst_33 = arith.constant dense<0.000000e+00> : vector<16x8xf32>
    %95 = tpu.matmul %92, %86, %cst_33 {dimension_numbers = #tpu.dot_dimension_numbers<[1], [0], [0], [1], [0, 0, 1, 1], [], []>} : vector<16x16xf32>, vector<16x8xf32>, vector<16x8xf32> -> vector<16x8xf32>
    %96 = tpu.reciprocal %94 {approx = true} : vector<16x1xf32> -> vector<16x1xf32>
    %97 = vector.broadcast %96 : vector<16x1xf32> to vector<16x8xf32>
    %98 = arith.mulf %95, %97 : vector<16x8xf32>
    %c0_34 = arith.constant 0 : index
    %c40 = arith.constant 40 : index
    %99 = vector.load %arg6[%c0_34, %c40] : memref<16x64xf32, #tpu.memory_space<vmem>>, vector<16x8xf32>
    tpu.vector_store %arg6[%c0_34, %c40], %98 {strides = array<i32>} : memref<16x64xf32, #tpu.memory_space<vmem>>, vector<16x8xf32>,
    %100 = vector.extract_strided_slice %3 {offsets = [0, 48], sizes = [16, 8], strides = [1, 1]} : vector<16x192xf32> to vector<16x8xf32>
    %101 = vector.extract_strided_slice %3 {offsets = [0, 112], sizes = [16, 8], strides = [1, 1]} : vector<16x192xf32> to vector<16x8xf32>
    %102 = vector.extract_strided_slice %3 {offsets = [0, 176], sizes = [16, 8], strides = [1, 1]} : vector<16x192xf32> to vector<16x8xf32>
    %cst_35 = arith.constant dense<0.000000e+00> : vector<16x16xf32>
    %103 = tpu.matmul %100, %101, %cst_35 {dimension_numbers = #tpu.dot_dimension_numbers<[1], [1], [0], [0], [0, 0, 1, 0], [], []>} : vector<16x8xf32>, vector<16x8xf32>, vector<16x16xf32> -> vector<16x16xf32>
    %cst_36 = arith.constant dense<0xFF800000> : vector<16xf32>
    %104 = vector.multi_reduction <maximumf>, %103, %cst_36 [1] : vector<16x16xf32> to vector<16xf32>
    %105 = vector.shape_cast %104 : vector<16xf32> to vector<16x1xf32>
    %106 = vector.broadcast %105 : vector<16x1xf32> to vector<16x16xf32>
    %107 = arith.subf %103, %106 : vector<16x16xf32>
    %108 = math.exp %107 : vector<16x16xf32>
    %cst_37 = arith.constant dense<0.000000e+00> : vector<16xf32>
    %109 = vector.multi_reduction <add>, %108, %cst_37 [1] : vector<16x16xf32> to vector<16xf32>
    %110 = vector.shape_cast %109 : vector<16xf32> to vector<16x1xf32>
    %cst_38 = arith.constant dense<0.000000e+00> : vector<16x8xf32>
    %111 = tpu.matmul %108, %102, %cst_38 {dimension_numbers = #tpu.dot_dimension_numbers<[1], [0], [0], [1], [0, 0, 1, 1], [], []>} : vector<16x16xf32>, vector<16x8xf32>, vector<16x8xf32> -> vector<16x8xf32>
    %112 = tpu.reciprocal %110 {approx = true} : vector<16x1xf32> -> vector<16x1xf32>
    %113 = vector.broadcast %112 : vector<16x1xf32> to vector<16x8xf32>
    %114 = arith.mulf %111, %113 : vector<16x8xf32>
    %c0_39 = arith.constant 0 : index
    %c48 = arith.constant 48 : index
    %115 = vector.load %arg6[%c0_39, %c48] : memref<16x64xf32, #tpu.memory_space<vmem>>, vector<16x8xf32>
    tpu.vector_store %arg6[%c0_39, %c48], %114 {strides = array<i32>} : memref<16x64xf32, #tpu.memory_space<vmem>>, vector<16x8xf32>,
    %116 = vector.extract_strided_slice %3 {offsets = [0, 56], sizes = [16, 8], strides = [1, 1]} : vector<16x192xf32> to vector<16x8xf32>
    %117 = vector.extract_strided_slice %3 {offsets = [0, 120], sizes = [16, 8], strides = [1, 1]} : vector<16x192xf32> to vector<16x8xf32>
    %118 = vector.extract_strided_slice %3 {offsets = [0, 184], sizes = [16, 8], strides = [1, 1]} : vector<16x192xf32> to vector<16x8xf32>
    %cst_40 = arith.constant dense<0.000000e+00> : vector<16x16xf32>
    %119 = tpu.matmul %116, %117, %cst_40 {dimension_numbers = #tpu.dot_dimension_numbers<[1], [1], [0], [0], [0, 0, 1, 0], [], []>} : vector<16x8xf32>, vector<16x8xf32>, vector<16x16xf32> -> vector<16x16xf32>
    %cst_41 = arith.constant dense<0xFF800000> : vector<16xf32>
    %120 = vector.multi_reduction <maximumf>, %119, %cst_41 [1] : vector<16x16xf32> to vector<16xf32>
    %121 = vector.shape_cast %120 : vector<16xf32> to vector<16x1xf32>
    %122 = vector.broadcast %121 : vector<16x1xf32> to vector<16x16xf32>
    %123 = arith.subf %119, %122 : vector<16x16xf32>
    %124 = math.exp %123 : vector<16x16xf32>
    %cst_42 = arith.constant dense<0.000000e+00> : vector<16xf32>
    %125 = vector.multi_reduction <add>, %124, %cst_42 [1] : vector<16x16xf32> to vector<16xf32>
    %126 = vector.shape_cast %125 : vector<16xf32> to vector<16x1xf32>
    %cst_43 = arith.constant dense<0.000000e+00> : vector<16x8xf32>
    %127 = tpu.matmul %124, %118, %cst_43 {dimension_numbers = #tpu.dot_dimension_numbers<[1], [0], [0], [1], [0, 0, 1, 1], [], []>} : vector<16x16xf32>, vector<16x8xf32>, vector<16x8xf32> -> vector<16x8xf32>
    %128 = tpu.reciprocal %126 {approx = true} : vector<16x1xf32> -> vector<16x1xf32>
    %129 = vector.broadcast %128 : vector<16x1xf32> to vector<16x8xf32>
    %130 = arith.mulf %127, %129 : vector<16x8xf32>
    %c0_44 = arith.constant 0 : index
    %c56 = arith.constant 56 : index
    %131 = vector.load %arg6[%c0_44, %c56] : memref<16x64xf32, #tpu.memory_space<vmem>>, vector<16x8xf32>
    tpu.vector_store %arg6[%c0_44, %c56], %130 {strides = array<i32>} : memref<16x64xf32, #tpu.memory_space<vmem>>, vector<16x8xf32>,
    %c0_45 = arith.constant 0 : index
    %c0_46 = arith.constant 0 : index
    %132 = vector.load %arg6[%c0_45, %c0_46] : memref<16x64xf32, #tpu.memory_space<vmem>>, vector<16x64xf32>
    %c0_47 = arith.constant 0 : index
    %c0_48 = arith.constant 0 : index
    %133 = vector.load %arg3[%c0_47, %c0_48] : memref<64x64xf32, #tpu.memory_space<vmem>>, vector<64x64xf32>
    %cst_49 = arith.constant dense<0.000000e+00> : vector<16x64xf32>
    %134 = tpu.matmul %132, %133, %cst_49 {dimension_numbers = #tpu.dot_dimension_numbers<[1], [0], [0], [1], [0, 0, 1, 1], [], []>} : vector<16x64xf32>, vector<64x64xf32>, vector<16x64xf32> -> vector<16x64xf32>
    %c0_50 = arith.constant 0 : index
    %c0_51 = arith.constant 0 : index
    %135 = vector.load %arg4[%c0_50, %c0_51] : memref<1x64xf32, #tpu.memory_space<vmem>>, vector<1x64xf32>
    %136 = vector.broadcast %135 : vector<1x64xf32> to vector<16x64xf32>
    %137 = arith.addf %134, %136 : vector<16x64xf32>
    %c0_52 = arith.constant 0 : index
    %c0_53 = arith.constant 0 : index
    %c0_54 = arith.constant 0 : index
    %138 = vector.load %arg5[%c0_52, %c0_53, %c0_54] : memref<1x16x64xf32, #tpu.memory_space<vmem>>, vector<1x16x64xf32>
    %139 = vector.shape_cast %138 : vector<1x16x64xf32> to vector<16x64xf32>
    %140 = vector.shape_cast %137 : vector<16x64xf32> to vector<1x16x64xf32>
    tpu.vector_store %arg5[%c0_52, %c0_53, %c0_54], %140 {strides = array<i32>} : memref<1x16x64xf32, #tpu.memory_space<vmem>>, vector<1x16x64xf32>,
    return
  }
  func.func @transform_0(%arg0: i32) -> (i32, i32, i32) {
    %c0_i32 = arith.constant 0 : i32
    %c0_i32_0 = arith.constant 0 : i32
    %c0_i32_1 = arith.constant 0 : i32
    return %arg0, %c0_i32, %c0_i32_0 : i32, i32, i32
  }
  func.func @transform_1(%arg0: i32) -> (i32, i32) {
    %c0_i32 = arith.constant 0 : i32
    %c0_i32_0 = arith.constant 0 : i32
    %c0_i32_1 = arith.constant 0 : i32
    return %c0_i32, %c0_i32_0 : i32, i32
  }
  func.func @transform_2(%arg0: i32) -> (i32, i32) {
    %c0_i32 = arith.constant 0 : i32
    %c0_i32_0 = arith.constant 0 : i32
    %c0_i32_1 = arith.constant 0 : i32
    return %c0_i32, %c0_i32_0 : i32, i32
  }
  func.func @transform_3(%arg0: i32) -> (i32, i32) {
    %c0_i32 = arith.constant 0 : i32
    %c0_i32_0 = arith.constant 0 : i32
    %c0_i32_1 = arith.constant 0 : i32
    return %c0_i32, %c0_i32_0 : i32, i32
  }
  func.func @transform_4(%arg0: i32) -> (i32, i32, i32) {
    %c0_i32 = arith.constant 0 : i32
    %c0_i32_0 = arith.constant 0 : i32
    %c0_i32_1 = arith.constant 0 : i32
    return %arg0, %c0_i32, %c0_i32_0 : i32, i32, i32
  }
}

</mosaic_0001>

<llo_original>
// kernel: tpu_custom_call.1
$region0: #{tpu_custom_call.1}
  #allocation0 [shape = 'u32[]', space=smem, size = 0x4, offset = 0x4, fixed_abs, tag = 'smem constant byte address 0x4 - core index']
  #allocation1 [shape = 'u32[72,128]{1,0:T(1,128)}', space=vmem, size = 0x9000, scoped, tag = 'internal scratch']
  #allocation2 [shape = 'f32[16,64]{1,0:T(8,128)}', space=vmem, size = 0x2000, scoped, tag = 'scratch operand']
  %s0 = inlined_call_operand.hbm [shape: f32[2,16,64], index: 0, kind: input, shape index: {}]
  %s1 = inlined_call_operand.hbm [shape: f32[64,192], index: 1, kind: input, shape index: {}]
  %s2 = inlined_call_operand.hbm [shape: f32[64,64], index: 2, kind: input, shape index: {}]
  %s3 = inlined_call_operand.vmem [shape: f32[1,64], index: 3, kind: input, shape index: {}]
  %s4 = inlined_call_operand.hbm [shape: f32[2,16,64], index: 4, kind: output, shape index: {}]
  %s5 = sld [smem:[#allocation0]]
  $region61: #{tpu_custom_call.1} parent=0
    _
  %s7 = ssub.s32 1, %s5
  %s8 = scalar_select 0, %s7, %s5
  $region1: #{tpu_custom_call.1} parent=0
    #allocation3 [shape = 'u8[16384]{0}', space=vmem, size = 0x4000, scoped, tag = 'input window, operand 0']
    #allocation4 [shape = 's32[2]{0}', space=sflag, size = 0x8, scoped, tag = 'scoped memory for tpu_custom_call.1']
    #allocation5 [shape = 's32[2]{0}', space=sflag, size = 0x8, scoped, tag = 'scoped memory for tpu_custom_call.1']
    #allocation6 [shape = 'u8[65536]{0}', space=vmem, size = 0x10000, scoped, tag = 'input window, operand 1, single buffered']
    #allocation7 [shape = 's32[1]{0}', space=sflag, size = 0x4, scoped, tag = 'scoped memory for tpu_custom_call.1']
    #allocation8 [shape = 'u8[32768]{0}', space=vmem, size = 0x8000, scoped, tag = 'input window, operand 2, single buffered']
    #allocation9 [shape = 'u8[16384]{0}', space=vmem, size = 0x4000, scoped, tag = 'output window, operand 0']
    %9 = vsyncpa [#allocation4], 0
    %s10 = scalar_lea.sflag [#allocation4], 1
    %11 = vsyncpa %s10, 0
    %12 = vsyncpa [#allocation7], 0
    %13 = vsyncpa [#allocation5], 0
    %s14 = scalar_lea.sflag [#allocation5], 1
    %15 = vsyncpa %s14, 0
    loop: start=0, step=1, limit=4
    $region2: #{tpu_custom_call.1} parent=1 // loop_pre_header
      _
    $region3: #{tpu_custom_call.1} parent=1 // loop_header
      %s17 = sphi 0, %s21
      %p18 = scmp.ge.s32.totalorder %s17, 4
      %s27 = sphi 0, %s29
      %s30 = sphi 0, %s27
      %s31 = sphi 0, %s30
      %s47 = sphi 0, %s31
      %s51 = sphi 0, %s51
      %s53 = sphi 0, %s51
      %s54 = sphi 0, %s53
      %s68 = sphi 0, %s54
      %s72 = sphi 0, %s72
      %s74 = sphi 0, %s72
      %s75 = sphi 0, %s74
      %s89 = sphi 0, %s75
      %s93 = sphi 0, %s93
      %s95 = sphi 0, %s93
      %s96 = sphi 0, %s95
      %s110 = sphi 0, %s96
      %s116 = sphi 0, %s118
      %s119 = sphi 0, %s116
      %s120 = sphi 0, %s119
      %s136 = sphi 0, %s120
    $region4: #{tpu_custom_call.1} parent=1 // loop_header_branch
      %20 = sbr.rel (%p18) target = $region8
    $region5: #{tpu_custom_call.1} parent=1 // loop_body
      %s22 = ssub.s32 %s17, 1
      %s23 = ssub.s32 %s17, 2
      %s24 = sadd.s32 %s17, 1
      %s25 = ssub.s32 %s17, %s24
      %p26 = scmp.eq.s32.totalorder %s25, 0
      %s28 = sadd.s32 %s27, 1
      %s29 = scalar_select %p26, %s27, %s28
      %p32 = pneg %p26
      %p33 = scmp.eq.s32.totalorder %s17, 1
      %p34 = por %p32, %p33
      %p35 = scmp.ne.s32.totalorder %s27, %s30
      %p36 = scmp.eq.s32.totalorder %s17, 0
      %p37 = por %p35, %p36
      %p38 = scmp.ne.s32.totalorder %s27, %s30
      %p39 = scmp.eq.s32.totalorder %s22, 1
      %p40 = por %p38, %p39
      %p41 = scmp.ne.s32.totalorder %s30, %s31
      %p42 = scmp.eq.s32.totalorder %s22, 0
      %p43 = por %p41, %p42
      %p44 = scmp.ne.s32.totalorder %s30, %s31
      %p45 = scmp.eq.s32.totalorder %s23, 1
      %p46 = por %p44, %p45
      %p48 = scmp.ne.s32.totalorder %s31, %s47
      %p49 = scmp.eq.s32.totalorder %s23, 0
      %p50 = por %p48, %p49
      %s52 = sadd.s32 %s51, 1
      %p55 = scmp.eq.s32.totalorder %s17, 1
      %p56 = scmp.ne.s32.totalorder %s51, %s53
      %p57 = scmp.eq.s32.totalorder %s17, 0
      %p58 = por %p56, %p57
      %p59 = scmp.ne.s32.totalorder %s51, %s53
      %p60 = scmp.eq.s32.totalorder %s22, 1
      %p61 = por %p59, %p60
      %p62 = scmp.ne.s32.totalorder %s53, %s54
      %p63 = scmp.eq.s32.totalorder %s22, 0
      %p64 = por %p62, %p63
      %p65 = scmp.ne.s32.totalorder %s53, %s54
      %p66 = scmp.eq.s32.totalorder %s23, 1
      %p67 = por %p65, %p66
      %p69 = scmp.ne.s32.totalorder %s54, %s68
      %p70 = scmp.eq.s32.totalorder %s23, 0
      %p71 = por %p69, %p70
      %s73 = sadd.s32 %s72, 1
      %p76 = scmp.eq.s32.totalorder %s17, 1
      %p77 = scmp.ne.s32.totalorder %s72, %s74
      %p78 = scmp.eq.s32.totalorder %s17, 0
      %p79 = por %p77, %p78
      %p80 = scmp.ne.s32.totalorder %s72, %s74
      %p81 = scmp.eq.s32.totalorder %s22, 1
      %p82 = por %p80, %p81
      %p83 = scmp.ne.s32.totalorder %s74, %s75
      %p84 = scmp.eq.s32.totalorder %s22, 0
      %p85 = por %p83, %p84
      %p86 = scmp.ne.s32.totalorder %s74, %s75
      %p87 = scmp.eq.s32.totalorder %s23, 1
      %p88 = por %p86, %p87
      %p90 = scmp.ne.s32.totalorder %s75, %s89
      %p91 = scmp.eq.s32.totalorder %s23, 0
      %p92 = por %p90, %p91
      %s94 = sadd.s32 %s93, 1
      %p97 = scmp.eq.s32.totalorder %s17, 1
      %p98 = scmp.ne.s32.totalorder %s93, %s95
      %p99 = scmp.eq.s32.totalorder %s17, 0
      %p100 = por %p98, %p99
      %p101 = scmp.ne.s32.totalorder %s93, %s95
      %p102 = scmp.eq.s32.totalorder %s22, 1
      %p103 = por %p101, %p102
      %p104 = scmp.ne.s32.totalorder %s95, %s96
      %p105 = scmp.eq.s32.totalorder %s22, 0
      %p106 = por %p104, %p105
      %p107 = scmp.ne.s32.totalorder %s95, %s96
      %p108 = scmp.eq.s32.totalorder %s23, 1
      %p109 = por %p107, %p108
      %p111 = scmp.ne.s32.totalorder %s96, %s110
      %p112 = scmp.eq.s32.totalorder %s23, 0
      %p113 = por %p111, %p112
      %s114 = ssub.s32 %s17, %s24
      %p115 = scmp.eq.s32.totalorder %s114, 0
      %s117 = sadd.s32 %s116, 1
      %s118 = scalar_select %p115, %s116, %s117
      %p121 = pneg %p115
      %p122 = scmp.eq.s32.totalorder %s17, 1
      %p123 = por %p121, %p122
      %p124 = scmp.ne.s32.totalorder %s116, %s119
      %p125 = scmp.eq.s32.totalorder %s17, 0
      %p126 = por %p124, %p125
      %p127 = scmp.ne.s32.totalorder %s116, %s119
      %p128 = scmp.eq.s32.totalorder %s22, 1
      %p129 = por %p127, %p128
      %p130 = scmp.ne.s32.totalorder %s119, %s120
      %p131 = scmp.eq.s32.totalorder %s22, 0
      %p132 = por %p130, %p131
      %p133 = scmp.ne.s32.totalorder %s119, %s120
      %p134 = scmp.eq.s32.totalorder %s23, 1
      %p135 = por %p133, %p134
      %p137 = scmp.ne.s32.totalorder %s120, %s136
      %p138 = scmp.eq.s32.totalorder %s23, 0
      %p139 = por %p137, %p138
      %p140 = scmp.le.s32.totalorder 1, %s17
      %p141 = scmp.lt.s32.totalorder %s17, 3
      %p142 = pnand %p140, %p141
      %p143 = pneg %p142
      // Predicated region
      $region9: #{tpu_custom_call.1} parent=5 // pred_check
        _
      $region10: #{tpu_custom_call.1} parent=5 // pred_check_branch
        %145 = sbr.rel (%p142) target = $region12
      $region11: #{tpu_custom_call.1} parent=5 // pred_region
        %s146 = ssub.s32 %s17, 1
        // Predicated region
        $region13: #{tpu_custom_call.1} parent=11 // pred_check
          %p147 = pneg %p64
        $region14: #{tpu_custom_call.1} parent=11 // pred_check_branch
          %149 = sbr.rel (%p147) target = $region16
        $region15: #{tpu_custom_call.1} parent=11 // pred_region
          %151 = vsyncadd [#allocation7], 0
          %s152 = sshll.u32 %s1, 4
          %s153 = int_to_ptr.hbm [resolvable:$true] %s152
          %s154 = sshll.u32 [#allocation6], 4
          %s155 = int_to_ptr.vmem [resolvable:$true] %s154
          %160 = dma.hbm_to_vmem [thread:$0]  %s153, 2048, %s155, [#allocation7], 256, 256, 16
        $region16: #{tpu_custom_call.1} parent=11 // pred_fallthru
          _
        // Predicated region
        $region17: #{tpu_custom_call.1} parent=11 // pred_check
          %p161 = pneg %p85
        $region18: #{tpu_custom_call.1} parent=11 // pred_check_branch
          %163 = sbr.rel (%p161) target = $region20
        $region19: #{tpu_custom_call.1} parent=11 // pred_region
          %165 = vsyncadd [#allocation7], 0
          %s166 = sshll.u32 %s2, 4
          %s167 = int_to_ptr.hbm [resolvable:$true] %s166
          %s168 = sshll.u32 [#allocation8], 4
          %s169 = int_to_ptr.vmem [resolvable:$true] %s168
          %174 = dma.hbm_to_vmem [thread:$0]  %s167, 1024, %s169, [#allocation7], 128, 128, 8
        $region20: #{tpu_custom_call.1} parent=11 // pred_fallthru
          _
        // Predicated region
        $region21: #{tpu_custom_call.1} parent=11 // pred_check
          %p175 = pneg %p106
        $region22: #{tpu_custom_call.1} parent=11 // pred_check_branch
          %177 = sbr.rel (%p175) target = $region24
        $region23: #{tpu_custom_call.1} parent=11 // pred_region
          _
        $region24: #{tpu_custom_call.1} parent=11 // pred_fallthru
          _
      $region12: #{tpu_custom_call.1} parent=5 // pred_fallthru
        _
      %p178 = scmp.lt.s32.totalorder %s17, 2
      // Predicated region
      $region25: #{tpu_custom_call.1} parent=5 // pred_check
        %p179 = pneg %p178
      $region26: #{tpu_custom_call.1} parent=5 // pred_check_branch
        %181 = sbr.rel (%p179) target = $region28
      $region27: #{tpu_custom_call.1} parent=5 // pred_region
        // Predicated region
        $region29: #{tpu_custom_call.1} parent=27 // pred_check
          %p182 = pneg %p37
        $region30: #{tpu_custom_call.1} parent=27 // pred_check_branch
          %184 = sbr.rel (%p182) target = $region32
        $region31: #{tpu_custom_call.1} parent=27 // pred_region
          %s185 = sand.u32 %s27, 1
          %s186 = scalar_lea.sflag [#allocation4], %s185
          %s187 = sand.u32 %s27, 1
          %s188 = smul.addr %s187, 16
          %s189 = scalar_lea.vmem [#allocation3], %s188
          %191 = vsyncadd %s186, 0
          %s192 = smul.addr %s17, 2
          %s193 = smul.addr %s192, 8
          %s194 = scalar_lea.hbm %s0, %s193
          %s195 = sshll.u32 %s194, 4
          %s196 = int_to_ptr.hbm [resolvable:$true] %s195
          %s197 = sshll.u32 %s189, 4
          %s198 = int_to_ptr.vmem [resolvable:$true] %s197
          %203 = dma.hbm_to_vmem [thread:$0]  %s196, 256, %s198, %s186, 128, 128, 8
        $region32: #{tpu_custom_call.1} parent=27 // pred_fallthru
          _
      $region28: #{tpu_custom_call.1} parent=5 // pred_fallthru
        _
      %p204 = scmp.le.s32.totalorder 1, %s17
      %p205 = scmp.lt.s32.totalorder %s17, 3
      %p206 = pnand %p204, %p205
      %p207 = pneg %p206
      // Predicated region
      $region33: #{tpu_custom_call.1} parent=5 // pred_check
        _
      $region34: #{tpu_custom_call.1} parent=5 // pred_check_branch
        %209 = sbr.rel (%p206) target = $region36
      $region35: #{tpu_custom_call.1} parent=5 // pred_region
        %s210 = ssub.s32 %s17, 1
        %s211 = sand.u32 %s30, 1
        %s212 = scalar_lea.sflag [#allocation4], %s211
        %s213 = sand.u32 %s30, 1
        %s214 = smul.addr %s213, 16
        %s215 = scalar_lea.vmem [#allocation3], %s214
        // Predicated region
        $region37: #{tpu_custom_call.1} parent=35 // pred_check
          %p216 = pneg %p43
        $region38: #{tpu_custom_call.1} parent=35 // pred_check_branch
          %218 = sbr.rel (%p216) target = $region40
        $region39: #{tpu_custom_call.1} parent=35 // pred_region
          %220 = dma.done %s212, 256
        $region40: #{tpu_custom_call.1} parent=35 // pred_fallthru
          _
        // Predicated region
        $region41: #{tpu_custom_call.1} parent=35 // pred_check
          %p221 = pneg %p64
        $region42: #{tpu_custom_call.1} parent=35 // pred_check_branch
          %223 = sbr.rel (%p221) target = $region44
        $region43: #{tpu_custom_call.1} parent=35 // pred_region
          %225 = dma.done [#allocation7], 2048
        $region44: #{tpu_custom_call.1} parent=35 // pred_fallthru
          _
        // Predicated region
        $region45: #{tpu_custom_call.1} parent=35 // pred_check
          %p226 = pneg %p85
        $region46: #{tpu_custom_call.1} parent=35 // pred_check_branch
          %228 = sbr.rel (%p226) target = $region48
        $region47: #{tpu_custom_call.1} parent=35 // pred_region
          %230 = dma.done [#allocation7], 1024
        $region48: #{tpu_custom_call.1} parent=35 // pred_fallthru
          _
        %s231 = sand.u32 %s30, 1
        %s232 = scalar_lea.sflag [#allocation4], %s231
        %s233 = sand.u32 %s30, 1
        %s234 = smul.addr %s233, 16
        %s235 = scalar_lea.vmem [#allocation3], %s234
        %p236 = pneg %p43
        %p237 = pneg %p40
        %p238 = pneg %p64
        %p239 = pneg %p61
        %p240 = pneg %p85
        %p241 = pneg %p82
        %p242 = pneg %p106
        %p243 = pneg %p103
        %p244 = pneg %p132
        %p245 = pneg %p129
        %s246 = sand.u32 %s119, 1
        %s247 = scalar_lea.sflag [#allocation5], %s246
        %s248 = sand.u32 %s119, 1
        %s249 = smul.addr %s248, 16
        %s250 = scalar_lea.vmem [#allocation9], %s249
        %v251 = vld [vmem:[%s215] sm:$0xff]
        %v252 = vld [vmem:[%s215 + $0x8] sm:$0xff]
        %v253 = vld [vmem:[#allocation6] sm:$0xff]
        %v254 = vld [vmem:[#allocation6 + $0x8] sm:$0xff]
        %v255 = vld [vmem:[#allocation6 + $0x10] sm:$0xff]
        %v256 = vld [vmem:[#allocation6 + $0x18] sm:$0xff]
        %v257 = vld [vmem:[#allocation6 + $0x20] sm:$0xff]
        %v258 = vld [vmem:[#allocation6 + $0x28] sm:$0xff]
        %v259 = vld [vmem:[#allocation6 + $0x30] sm:$0xff]
        %v260 = vld [vmem:[#allocation6 + $0x38] sm:$0xff]
        %v261 = vld [vmem:[#allocation6 + $0x40] sm:$0xff]
        %v262 = vld [vmem:[#allocation6 + $0x48] sm:$0xff]
        %v263 = vld [vmem:[#allocation6 + $0x50] sm:$0xff]
        %v264 = vld [vmem:[#allocation6 + $0x58] sm:$0xff]
        %v265 = vld [vmem:[#allocation6 + $0x60] sm:$0xff]
        %v266 = vld [vmem:[#allocation6 + $0x68] sm:$0xff]
        %v267 = vld [vmem:[#allocation6 + $0x70] sm:$0xff]
        %v268 = vld [vmem:[#allocation6 + $0x78] sm:$0xff]
        %vm269 = vcmask 523264
        %v271 = vsel %vm269, %v251, 0
        %v274 = vsel %vm269, %v252, 0
        %276 = vmatpush.msra.mxu0 0.0
        %277 = vmatpush.msra.mxu0 0.0
        %278 = vmatpush.msra.mxu0 0.0
        %279 = vmatpush.msra.mxu0 0.0
        %280 = vmatpush.msra.mxu0 0.0
        %281 = vmatpush.msra.mxu0 0.0
        %282 = vmatpush.msra.mxu0 0.0
        %283 = vmatpush.msra.mxu0 0.0
        %284 = vmatpush.msra.mxu0 %v267
        %285 = vmatpush.msra.mxu0 %v265
        %286 = vmatpush.msra.mxu0 %v263
        %287 = vmatpush.msra.mxu0 %v261
        %288 = vmatpush.msra.mxu0 %v259
        %289 = vmatpush.msra.mxu0 %v257
        %290 = vmatpush.msra.mxu0 %v255
        %291 = vmatpush.msra.mxu0 %v253
        %292 = vmatmul.f32.gmra.mxu0 %v271
        %v293 = vpop.f32.mrf.mxu0
        %v294 = vadd.f32 0.0, %v293
        %295 = vmatmul.f32.gmra.mxu0 %v274
        %v296 = vpop.f32.mrf.mxu0
        %v297 = vadd.f32 0.0, %v296
        %298 = vdwg.mxu0
        %299 = vmatpush.msra.mxu0 0.0
        %300 = vmatpush.msra.mxu0 0.0
        %301 = vmatpush.msra.mxu0 0.0
        %302 = vmatpush.msra.mxu0 0.0
        %303 = vmatpush.msra.mxu0 0.0
        %304 = vmatpush.msra.mxu0 0.0
        %305 = vmatpush.msra.mxu0 0.0
        %306 = vmatpush.msra.mxu0 0.0
        %307 = vmatpush.msra.mxu0 %v268
        %308 = vmatpush.msra.mxu0 %v266
        %309 = vmatpush.msra.mxu0 %v264
        %310 = vmatpush.msra.mxu0 %v262
        %311 = vmatpush.msra.mxu0 %v260
        %312 = vmatpush.msra.mxu0 %v258
        %313 = vmatpush.msra.mxu0 %v256
        %314 = vmatpush.msra.mxu0 %v254
        %315 = vmatmul.f32.gmra.mxu0 %v271
        %v316 = vpop.f32.mrf.mxu0
        %v317 = vadd.f32 0.0, %v316
        %318 = vmatmul.f32.gmra.mxu0 %v274
        %v319 = vpop.f32.mrf.mxu0
        %v320 = vadd.f32 0.0, %v319
        %321 = vdwg.mxu0
        %324 = vrot.lane.b32.xlu0 %v294, 64
        %v325 = vpop.permute.xlu0 %324
        %326 = vrot.lane.b32.xlu0 %v297, 64
        %v327 = vpop.permute.xlu0 %326
        %vm328 = vcmask 64512
        %v329 = vsel %vm328, %v294, 0
        %v331 = vsel %vm328, %v297, 0
        %v333 = vsel %vm328, %v325, 0
        %v335 = vsel %vm328, %v327, 0
        %337 = vmatpush.xpose.msra.mxu0 0.0
        %338 = vmatpush.xpose.msra.mxu0 0.0
        %339 = vmatpush.xpose.msra.mxu0 0.0
        %340 = vmatpush.xpose.msra.mxu0 0.0
        %341 = vmatpush.xpose.msra.mxu0 0.0
        %342 = vmatpush.xpose.msra.mxu0 0.0
        %343 = vmatpush.xpose.msra.mxu0 0.0
        %344 = vmatpush.xpose.msra.mxu0 0.0
        %345 = vmatpush.xpose.msra.mxu0 0.0
        %346 = vmatpush.xpose.msra.mxu0 0.0
        %347 = vmatpush.xpose.msra.mxu0 0.0
        %348 = vmatpush.xpose.msra.mxu0 0.0
        %349 = vmatpush.xpose.msra.mxu0 0.0
        %350 = vmatpush.xpose.msra.mxu0 0.0
        %351 = vmatpush.xpose.msra.mxu0 %v335
        %352 = vmatpush.xpose.msra.mxu0 %v333
        %353 = vmatmul.f32.gmra.mxu0 %v329
        %v354 = vpop.f32.mrf.mxu0
        %v355 = vadd.f32 0.0, %v354
        %356 = vmatmul.f32.gmra.mxu0 %v331
        %v357 = vpop.f32.mrf.mxu0
        %v358 = vadd.f32 0.0, %v357
        %359 = vdwg.mxu0
        %vm360 = vcmask 130048
        %v361 = vsel %vm360, %v355, -inf
        %362 = vmax.xlane.f32.xlu0 %v361
        %v363 = vpop.xlane.xlu0 %362
        %v364 = vsel %vm360, %v358, -inf
        %365 = vmax.xlane.f32.xlu0 %v364
        %v366 = vpop.xlane.xlu0 %365
        %v367 = vsub.f32 %v355, %v363
        %v368 = vsub.f32 %v358, %v366
        %v369 = vmul.f32 %v367, 1.442695
        %v370 = vpow.pop %v369
        %v371 = vmul.f32 %v368, 1.442695
        %v372 = vpow.pop %v371
        %v373 = vsel %vm360, %v370, 0.0
        %374 = vadd.xlane.f32.xlu0 %v373
        %v375 = vpop.xlane.xlu0 %374
        %v376 = vsel %vm360, %v372, 0.0
        %377 = vadd.xlane.f32.xlu0 %v376
        %v378 = vpop.xlane.xlu0 %377
        %v380 = vsel %vm360, %v370, 0
        %v383 = vsel %vm360, %v372, 0
        %385 = vmatpush.msra.mxu0 0.0
        %386 = vmatpush.msra.mxu0 0.0
        %387 = vmatpush.msra.mxu0 0.0
        %388 = vmatpush.msra.mxu0 0.0
        %389 = vmatpush.msra.mxu0 0.0
        %390 = vmatpush.msra.mxu0 0.0
        %391 = vmatpush.msra.mxu0 0.0
        %392 = vmatpush.msra.mxu0 0.0
        %393 = vmatpush.msra.mxu0 0.0
        %394 = vmatpush.msra.mxu0 0.0
        %395 = vmatpush.msra.mxu0 0.0
        %396 = vmatpush.msra.mxu0 0.0
        %397 = vmatpush.msra.mxu0 0.0
        %398 = vmatpush.msra.mxu0 0.0
        %399 = vmatpush.msra.mxu0 %v320
        %400 = vmatpush.msra.mxu0 %v317
        %401 = vmatmul.f32.gmra.mxu0 %v380
        %v402 = vpop.f32.mrf.mxu0
        %v403 = vadd.f32 0.0, %v402
        %404 = vmatmul.f32.gmra.mxu0 %v383
        %v405 = vpop.f32.mrf.mxu0
        %v406 = vadd.f32 0.0, %v405
        %407 = vdwg.mxu0
        %v408 = vrcp.pop %v375
        %v409 = vrcp.pop %v378
        %v410 = vmul.f32 %v403, %v408
        %v411 = vmul.f32 %v406, %v409
        %412 = vst.msk [vmem:[#allocation2] sm:$0xff] %vm328, %v410
        %413 = vst.msk [vmem:[#allocation2 + $0x8] sm:$0xff] %vm328, %v411
        %414 = vrot.lane.b32.xlu0 %v294, 120
        %v415 = vpop.permute.xlu0 %414
        %416 = vrot.lane.b32.xlu0 %v297, 120
        %v417 = vpop.permute.xlu0 %416
        %418 = vrot.lane.b32.xlu0 %v294, 56
        %v419 = vpop.permute.xlu0 %418
        %420 = vrot.lane.b32.xlu0 %v297, 56
        %v421 = vpop.permute.xlu0 %420
        %v422 = vsel %vm328, %v415, 0
        %v424 = vsel %vm328, %v417, 0
        %v426 = vsel %vm328, %v419, 0
        %v428 = vsel %vm328, %v421, 0
        %430 = vmatpush.xpose.msra.mxu0 0.0
        %431 = vmatpush.xpose.msra.mxu0 0.0
        %432 = vmatpush.xpose.msra.mxu0 0.0
        %433 = vmatpush.xpose.msra.mxu0 0.0
        %434 = vmatpush.xpose.msra.mxu0 0.0
        %435 = vmatpush.xpose.msra.mxu0 0.0
        %436 = vmatpush.xpose.msra.mxu0 0.0
        %437 = vmatpush.xpose.msra.mxu0 0.0
        %438 = vmatpush.xpose.msra.mxu0 0.0
        %439 = vmatpush.xpose.msra.mxu0 0.0
        %440 = vmatpush.xpose.msra.mxu0 0.0
        %441 = vmatpush.xpose.msra.mxu0 0.0
        %442 = vmatpush.xpose.msra.mxu0 0.0
        %443 = vmatpush.xpose.msra.mxu0 0.0
        %444 = vmatpush.xpose.msra.mxu0 %v428
        %445 = vmatpush.xpose.msra.mxu0 %v426
        %446 = vmatmul.f32.gmra.mxu0 %v422
        %v447 = vpop.f32.mrf.mxu0
        %v448 = vadd.f32 0.0, %v447
        %449 = vmatmul.f32.gmra.mxu0 %v424
        %v450 = vpop.f32.mrf.mxu0
        %v451 = vadd.f32 0.0, %v450
        %452 = vdwg.mxu0
        %v453 = vsel %vm360, %v448, -inf
        %454 = vmax.xlane.f32.xlu0 %v453
        %v455 = vpop.xlane.xlu0 %454
        %v456 = vsel %vm360, %v451, -inf
        %457 = vmax.xlane.f32.xlu0 %v456
        %v458 = vpop.xlane.xlu0 %457
        %v459 = vsub.f32 %v448, %v455
        %v460 = vsub.f32 %v451, %v458
        %v461 = vmul.f32 %v459, 1.442695
        %v462 = vpow.pop %v461
        %v463 = vmul.f32 %v460, 1.442695
        %v464 = vpow.pop %v463
        %v465 = vsel %vm360, %v462, 0.0
        %466 = vadd.xlane.f32.xlu0 %v465
        %v467 = vpop.xlane.xlu0 %466
        %v468 = vsel %vm360, %v464, 0.0
        %469 = vadd.xlane.f32.xlu0 %v468
        %v470 = vpop.xlane.xlu0 %469
        %473 = vrot.lane.b32.xlu0 %v317, 120
        %v474 = vpop.permute.xlu0 %473
        %475 = vrot.lane.b32.xlu0 %v320, 120
        %v476 = vpop.permute.xlu0 %475
        %v480 = vsel %vm360, %v462, 0
        %v483 = vsel %vm360, %v464, 0
        %485 = vmatpush.msra.mxu0 0.0
        %486 = vmatpush.msra.mxu0 0.0
        %487 = vmatpush.msra.mxu0 0.0
        %488 = vmatpush.msra.mxu0 0.0
        %489 = vmatpush.msra.mxu0 0.0
        %490 = vmatpush.msra.mxu0 0.0
        %491 = vmatpush.msra.mxu0 0.0
        %492 = vmatpush.msra.mxu0 0.0
        %493 = vmatpush.msra.mxu0 0.0
        %494 = vmatpush.msra.mxu0 0.0
        %495 = vmatpush.msra.mxu0 0.0
        %496 = vmatpush.msra.mxu0 0.0
        %497 = vmatpush.msra.mxu0 0.0
        %498 = vmatpush.msra.mxu0 0.0
        %499 = vmatpush.msra.mxu0 %v476
        %500 = vmatpush.msra.mxu0 %v474
        %501 = vmatmul.f32.gmra.mxu0 %v480
        %v502 = vpop.f32.mrf.mxu0
        %v503 = vadd.f32 0.0, %v502
        %504 = vmatmul.f32.gmra.mxu0 %v483
        %v505 = vpop.f32.mrf.mxu0
        %v506 = vadd.f32 0.0, %v505
        %507 = vdwg.mxu0
        %v508 = vrcp.pop %v467
        %v509 = vrcp.pop %v470
        %v510 = vmul.f32 %v503, %v508
        %v511 = vmul.f32 %v506, %v509
        %514 = vrot.lane.b32.xlu0 %v510, 8
        %v515 = vpop.permute.xlu0 %514
        %516 = vrot.lane.b32.xlu0 %v511, 8
        %v517 = vpop.permute.xlu0 %516
        %vm520 = vcmask 130112
        %521 = vst.msk [vmem:[#allocation2] sm:$0xff] %vm520, %v515
        %522 = vst.msk [vmem:[#allocation2 + $0x8] sm:$0xff] %vm520, %v517
        %523 = vrot.lane.b32.xlu0 %v294, 112
        %v524 = vpop.permute.xlu0 %523
        %525 = vrot.lane.b32.xlu0 %v297, 112
        %v526 = vpop.permute.xlu0 %525
        %527 = vrot.lane.b32.xlu0 %v294, 48
        %v528 = vpop.permute.xlu0 %527
        %529 = vrot.lane.b32.xlu0 %v297, 48
        %v530 = vpop.permute.xlu0 %529
        %v531 = vsel %vm328, %v524, 0
        %v533 = vsel %vm328, %v526, 0
        %v535 = vsel %vm328, %v528, 0
        %v537 = vsel %vm328, %v530, 0
        %539 = vmatpush.xpose.msra.mxu0 0.0
        %540 = vmatpush.xpose.msra.mxu0 0.0
        %541 = vmatpush.xpose.msra.mxu0 0.0
        %542 = vmatpush.xpose.msra.mxu0 0.0
        %543 = vmatpush.xpose.msra.mxu0 0.0
        %544 = vmatpush.xpose.msra.mxu0 0.0
        %545 = vmatpush.xpose.msra.mxu0 0.0
        %546 = vmatpush.xpose.msra.mxu0 0.0
        %547 = vmatpush.xpose.msra.mxu0 0.0
        %548 = vmatpush.xpose.msra.mxu0 0.0
        %549 = vmatpush.xpose.msra.mxu0 0.0
        %550 = vmatpush.xpose.msra.mxu0 0.0
        %551 = vmatpush.xpose.msra.mxu0 0.0
        %552 = vmatpush.xpose.msra.mxu0 0.0
        %553 = vmatpush.xpose.msra.mxu0 %v537
        %554 = vmatpush.xpose.msra.mxu0 %v535
        %555 = vmatmul.f32.gmra.mxu0 %v531
        %v556 = vpop.f32.mrf.mxu0
        %v557 = vadd.f32 0.0, %v556
        %558 = vmatmul.f32.gmra.mxu0 %v533
        %v559 = vpop.f32.mrf.mxu0
        %v560 = vadd.f32 0.0, %v559
        %561 = vdwg.mxu0
        %v562 = vsel %vm360, %v557, -inf
        %563 = vmax.xlane.f32.xlu0 %v562
        %v564 = vpop.xlane.xlu0 %563
        %v565 = vsel %vm360, %v560, -inf
        %566 = vmax.xlane.f32.xlu0 %v565
        %v567 = vpop.xlane.xlu0 %566
        %v568 = vsub.f32 %v557, %v564
        %v569 = vsub.f32 %v560, %v567
        %v570 = vmul.f32 %v568, 1.442695
        %v571 = vpow.pop %v570
        %v572 = vmul.f32 %v569, 1.442695
        %v573 = vpow.pop %v572
        %v574 = vsel %vm360, %v571, 0.0
        %575 = vadd.xlane.f32.xlu0 %v574
        %v576 = vpop.xlane.xlu0 %575
        %v577 = vsel %vm360, %v573, 0.0
        %578 = vadd.xlane.f32.xlu0 %v577
        %v579 = vpop.xlane.xlu0 %578
        %580 = vrot.lane.b32.xlu0 %v317, 112
        %v581 = vpop.permute.xlu0 %580
        %582 = vrot.lane.b32.xlu0 %v320, 112
        %v583 = vpop.permute.xlu0 %582
        %v587 = vsel %vm360, %v571, 0
        %v590 = vsel %vm360, %v573, 0
        %592 = vmatpush.msra.mxu0 0.0
        %593 = vmatpush.msra.mxu0 0.0
        %594 = vmatpush.msra.mxu0 0.0
        %595 = vmatpush.msra.mxu0 0.0
        %596 = vmatpush.msra.mxu0 0.0
        %597 = vmatpush.msra.mxu0 0.0
        %598 = vmatpush.msra.mxu0 0.0
        %599 = vmatpush.msra.mxu0 0.0
        %600 = vmatpush.msra.mxu0 0.0
        %601 = vmatpush.msra.mxu0 0.0
        %602 = vmatpush.msra.mxu0 0.0
        %603 = vmatpush.msra.mxu0 0.0
        %604 = vmatpush.msra.mxu0 0.0
        %605 = vmatpush.msra.mxu0 0.0
        %606 = vmatpush.msra.mxu0 %v583
        %607 = vmatpush.msra.mxu0 %v581
        %608 = vmatmul.f32.gmra.mxu0 %v587
        %v609 = vpop.f32.mrf.mxu0
        %v610 = vadd.f32 0.0, %v609
        %611 = vmatmul.f32.gmra.mxu0 %v590
        %v612 = vpop.f32.mrf.mxu0
        %v613 = vadd.f32 0.0, %v612
        %614 = vdwg.mxu0
        %v615 = vrcp.pop %v576
        %v616 = vrcp.pop %v579
        %v617 = vmul.f32 %v610, %v615
        %v618 = vmul.f32 %v613, %v616
        %621 = vrot.lane.b32.xlu0 %v617, 16
        %v622 = vpop.permute.xlu0 %621
        %623 = vrot.lane.b32.xlu0 %v618, 16
        %v624 = vpop.permute.xlu0 %623
        %vm627 = vcmask 195712
        %628 = vst.msk [vmem:[#allocation2] sm:$0xff] %vm627, %v622
        %629 = vst.msk [vmem:[#allocation2 + $0x8] sm:$0xff] %vm627, %v624
        %630 = vrot.lane.b32.xlu0 %v294, 104
        %v631 = vpop.permute.xlu0 %630
        %632 = vrot.lane.b32.xlu0 %v297, 104
        %v633 = vpop.permute.xlu0 %632
        %634 = vrot.lane.b32.xlu0 %v294, 40
        %v635 = vpop.permute.xlu0 %634
        %636 = vrot.lane.b32.xlu0 %v297, 40
        %v637 = vpop.permute.xlu0 %636
        %v638 = vsel %vm328, %v631, 0
        %v640 = vsel %vm328, %v633, 0
        %v642 = vsel %vm328, %v635, 0
        %v644 = vsel %vm328, %v637, 0
        %646 = vmatpush.xpose.msra.mxu0 0.0
        %647 = vmatpush.xpose.msra.mxu0 0.0
        %648 = vmatpush.xpose.msra.mxu0 0.0
        %649 = vmatpush.xpose.msra.mxu0 0.0
        %650 = vmatpush.xpose.msra.mxu0 0.0
        %651 = vmatpush.xpose.msra.mxu0 0.0
        %652 = vmatpush.xpose.msra.mxu0 0.0
        %653 = vmatpush.xpose.msra.mxu0 0.0
        %654 = vmatpush.xpose.msra.mxu0 0.0
        %655 = vmatpush.xpose.msra.mxu0 0.0
        %656 = vmatpush.xpose.msra.mxu0 0.0
        %657 = vmatpush.xpose.msra.mxu0 0.0
        %658 = vmatpush.xpose.msra.mxu0 0.0
        %659 = vmatpush.xpose.msra.mxu0 0.0
        %660 = vmatpush.xpose.msra.mxu0 %v644
        %661 = vmatpush.xpose.msra.mxu0 %v642
        %662 = vmatmul.f32.gmra.mxu0 %v638
        %v663 = vpop.f32.mrf.mxu0
        %v664 = vadd.f32 0.0, %v663
        %665 = vmatmul.f32.gmra.mxu0 %v640
        %v666 = vpop.f32.mrf.mxu0
        %v667 = vadd.f32 0.0, %v666
        %668 = vdwg.mxu0
        %v669 = vsel %vm360, %v664, -inf
        %670 = vmax.xlane.f32.xlu0 %v669
        %v671 = vpop.xlane.xlu0 %670
        %v672 = vsel %vm360, %v667, -inf
        %673 = vmax.xlane.f32.xlu0 %v672
        %v674 = vpop.xlane.xlu0 %673
        %v675 = vsub.f32 %v664, %v671
        %v676 = vsub.f32 %v667, %v674
        %v677 = vmul.f32 %v675, 1.442695
        %v678 = vpow.pop %v677
        %v679 = vmul.f32 %v676, 1.442695
        %v680 = vpow.pop %v679
        %v681 = vsel %vm360, %v678, 0.0
        %682 = vadd.xlane.f32.xlu0 %v681
        %v683 = vpop.xlane.xlu0 %682
        %v684 = vsel %vm360, %v680, 0.0
        %685 = vadd.xlane.f32.xlu0 %v684
        %v686 = vpop.xlane.xlu0 %685
        %687 = vrot.lane.b32.xlu0 %v317, 104
        %v688 = vpop.permute.xlu0 %687
        %689 = vrot.lane.b32.xlu0 %v320, 104
        %v690 = vpop.permute.xlu0 %689
        %v694 = vsel %vm360, %v678, 0
        %v697 = vsel %vm360, %v680, 0
        %699 = vmatpush.msra.mxu0 0.0
        %700 = vmatpush.msra.mxu0 0.0
        %701 = vmatpush.msra.mxu0 0.0
        %702 = vmatpush.msra.mxu0 0.0
        %703 = vmatpush.msra.mxu0 0.0
        %704 = vmatpush.msra.mxu0 0.0
        %705 = vmatpush.msra.mxu0 0.0
        %706 = vmatpush.msra.mxu0 0.0
        %707 = vmatpush.msra.mxu0 0.0
        %708 = vmatpush.msra.mxu0 0.0
        %709 = vmatpush.msra.mxu0 0.0
        %710 = vmatpush.msra.mxu0 0.0
        %711 = vmatpush.msra.mxu0 0.0
        %712 = vmatpush.msra.mxu0 0.0
        %713 = vmatpush.msra.mxu0 %v690
        %714 = vmatpush.msra.mxu0 %v688
        %715 = vmatmul.f32.gmra.mxu0 %v694
        %v716 = vpop.f32.mrf.mxu0
        %v717 = vadd.f32 0.0, %v716
        %718 = vmatmul.f32.gmra.mxu0 %v697
        %v719 = vpop.f32.mrf.mxu0
        %v720 = vadd.f32 0.0, %v719
        %721 = vdwg.mxu0
        %v722 = vrcp.pop %v683
        %v723 = vrcp.pop %v686
        %v724 = vmul.f32 %v717, %v722
        %v725 = vmul.f32 %v720, %v723
        %728 = vrot.lane.b32.xlu0 %v724, 24
        %v729 = vpop.permute.xlu0 %728
        %730 = vrot.lane.b32.xlu0 %v725, 24
        %v731 = vpop.permute.xlu0 %730
        %vm734 = vcmask 261312
        %735 = vst.msk [vmem:[#allocation2] sm:$0xff] %vm734, %v729
        %736 = vst.msk [vmem:[#allocation2 + $0x8] sm:$0xff] %vm734, %v731
        %737 = vrot.lane.b32.xlu0 %v294, 96
        %v738 = vpop.permute.xlu0 %737
        %739 = vrot.lane.b32.xlu0 %v297, 96
        %v740 = vpop.permute.xlu0 %739
        %741 = vrot.lane.b32.xlu0 %v294, 32
        %v742 = vpop.permute.xlu0 %741
        %743 = vrot.lane.b32.xlu0 %v297, 32
        %v744 = vpop.permute.xlu0 %743
        %v745 = vsel %vm328, %v738, 0
        %v747 = vsel %vm328, %v740, 0
        %v749 = vsel %vm328, %v742, 0
        %v751 = vsel %vm328, %v744, 0
        %753 = vmatpush.xpose.msra.mxu0 0.0
        %754 = vmatpush.xpose.msra.mxu0 0.0
        %755 = vmatpush.xpose.msra.mxu0 0.0
        %756 = vmatpush.xpose.msra.mxu0 0.0
        %757 = vmatpush.xpose.msra.mxu0 0.0
        %758 = vmatpush.xpose.msra.mxu0 0.0
        %759 = vmatpush.xpose.msra.mxu0 0.0
        %760 = vmatpush.xpose.msra.mxu0 0.0
        %761 = vmatpush.xpose.msra.mxu0 0.0
        %762 = vmatpush.xpose.msra.mxu0 0.0
        %763 = vmatpush.xpose.msra.mxu0 0.0
        %764 = vmatpush.xpose.msra.mxu0 0.0
        %765 = vmatpush.xpose.msra.mxu0 0.0
        %766 = vmatpush.xpose.msra.mxu0 0.0
        %767 = vmatpush.xpose.msra.mxu0 %v751
        %768 = vmatpush.xpose.msra.mxu0 %v749
        %769 = vmatmul.f32.gmra.mxu0 %v745
        %v770 = vpop.f32.mrf.mxu0
        %v771 = vadd.f32 0.0, %v770
        %772 = vmatmul.f32.gmra.mxu0 %v747
        %v773 = vpop.f32.mrf.mxu0
        %v774 = vadd.f32 0.0, %v773
        %775 = vdwg.mxu0
        %v776 = vsel %vm360, %v771, -inf
        %777 = vmax.xlane.f32.xlu0 %v776
        %v778 = vpop.xlane.xlu0 %777
        %v779 = vsel %vm360, %v774, -inf
        %780 = vmax.xlane.f32.xlu0 %v779
        %v781 = vpop.xlane.xlu0 %780
        %v782 = vsub.f32 %v771, %v778
        %v783 = vsub.f32 %v774, %v781
        %v784 = vmul.f32 %v782, 1.442695
        %v785 = vpow.pop %v784
        %v786 = vmul.f32 %v783, 1.442695
        %v787 = vpow.pop %v786
        %v788 = vsel %vm360, %v785, 0.0
        %789 = vadd.xlane.f32.xlu0 %v788
        %v790 = vpop.xlane.xlu0 %789
        %v791 = vsel %vm360, %v787, 0.0
        %792 = vadd.xlane.f32.xlu0 %v791
        %v793 = vpop.xlane.xlu0 %792
        %794 = vrot.lane.b32.xlu0 %v317, 96
        %v795 = vpop.permute.xlu0 %794
        %796 = vrot.lane.b32.xlu0 %v320, 96
        %v797 = vpop.permute.xlu0 %796
        %v801 = vsel %vm360, %v785, 0
        %v804 = vsel %vm360, %v787, 0
        %806 = vmatpush.msra.mxu0 0.0
        %807 = vmatpush.msra.mxu0 0.0
        %808 = vmatpush.msra.mxu0 0.0
        %809 = vmatpush.msra.mxu0 0.0
        %810 = vmatpush.msra.mxu0 0.0
        %811 = vmatpush.msra.mxu0 0.0
        %812 = vmatpush.msra.mxu0 0.0
        %813 = vmatpush.msra.mxu0 0.0
        %814 = vmatpush.msra.mxu0 0.0
        %815 = vmatpush.msra.mxu0 0.0
        %816 = vmatpush.msra.mxu0 0.0
        %817 = vmatpush.msra.mxu0 0.0
        %818 = vmatpush.msra.mxu0 0.0
        %819 = vmatpush.msra.mxu0 0.0
        %820 = vmatpush.msra.mxu0 %v797
        %821 = vmatpush.msra.mxu0 %v795
        %822 = vmatmul.f32.gmra.mxu0 %v801
        %v823 = vpop.f32.mrf.mxu0
        %v824 = vadd.f32 0.0, %v823
        %825 = vmatmul.f32.gmra.mxu0 %v804
        %v826 = vpop.f32.mrf.mxu0
        %v827 = vadd.f32 0.0, %v826
        %828 = vdwg.mxu0
        %v829 = vrcp.pop %v790
        %v830 = vrcp.pop %v793
        %v831 = vmul.f32 %v824, %v829
        %v832 = vmul.f32 %v827, %v830
        %835 = vrot.lane.b32.xlu0 %v831, 32
        %v836 = vpop.permute.xlu0 %835
        %837 = vrot.lane.b32.xlu0 %v832, 32
        %v838 = vpop.permute.xlu0 %837
        %vm841 = vcmask 326912
        %842 = vst.msk [vmem:[#allocation2] sm:$0xff] %vm841, %v836
        %843 = vst.msk [vmem:[#allocation2 + $0x8] sm:$0xff] %vm841, %v838
        %844 = vrot.lane.b32.xlu0 %v294, 88
        %v845 = vpop.permute.xlu0 %844
        %846 = vrot.lane.b32.xlu0 %v297, 88
        %v847 = vpop.permute.xlu0 %846
        %848 = vrot.lane.b32.xlu0 %v294, 24
        %v849 = vpop.permute.xlu0 %848
        %850 = vrot.lane.b32.xlu0 %v297, 24
        %v851 = vpop.permute.xlu0 %850
        %v852 = vsel %vm328, %v845, 0
        %v854 = vsel %vm328, %v847, 0
        %v856 = vsel %vm328, %v849, 0
        %v858 = vsel %vm328, %v851, 0
        %860 = vmatpush.xpose.msra.mxu0 0.0
        %861 = vmatpush.xpose.msra.mxu0 0.0
        %862 = vmatpush.xpose.msra.mxu0 0.0
        %863 = vmatpush.xpose.msra.mxu0 0.0
        %864 = vmatpush.xpose.msra.mxu0 0.0
        %865 = vmatpush.xpose.msra.mxu0 0.0
        %866 = vmatpush.xpose.msra.mxu0 0.0
        %867 = vmatpush.xpose.msra.mxu0 0.0
        %868 = vmatpush.xpose.msra.mxu0 0.0
        %869 = vmatpush.xpose.msra.mxu0 0.0
        %870 = vmatpush.xpose.msra.mxu0 0.0
        %871 = vmatpush.xpose.msra.mxu0 0.0
        %872 = vmatpush.xpose.msra.mxu0 0.0
        %873 = vmatpush.xpose.msra.mxu0 0.0
        %874 = vmatpush.xpose.msra.mxu0 %v858
        %875 = vmatpush.xpose.msra.mxu0 %v856
        %876 = vmatmul.f32.gmra.mxu0 %v852
        %v877 = vpop.f32.mrf.mxu0
        %v878 = vadd.f32 0.0, %v877
        %879 = vmatmul.f32.gmra.mxu0 %v854
        %v880 = vpop.f32.mrf.mxu0
        %v881 = vadd.f32 0.0, %v880
        %882 = vdwg.mxu0
        %v883 = vsel %vm360, %v878, -inf
        %884 = vmax.xlane.f32.xlu0 %v883
        %v885 = vpop.xlane.xlu0 %884
        %v886 = vsel %vm360, %v881, -inf
        %887 = vmax.xlane.f32.xlu0 %v886
        %v888 = vpop.xlane.xlu0 %887
        %v889 = vsub.f32 %v878, %v885
        %v890 = vsub.f32 %v881, %v888
        %v891 = vmul.f32 %v889, 1.442695
        %v892 = vpow.pop %v891
        %v893 = vmul.f32 %v890, 1.442695
        %v894 = vpow.pop %v893
        %v895 = vsel %vm360, %v892, 0.0
        %896 = vadd.xlane.f32.xlu0 %v895
        %v897 = vpop.xlane.xlu0 %896
        %v898 = vsel %vm360, %v894, 0.0
        %899 = vadd.xlane.f32.xlu0 %v898
        %v900 = vpop.xlane.xlu0 %899
        %901 = vrot.lane.b32.xlu0 %v317, 88
        %v902 = vpop.permute.xlu0 %901
        %903 = vrot.lane.b32.xlu0 %v320, 88
        %v904 = vpop.permute.xlu0 %903
        %v908 = vsel %vm360, %v892, 0
        %v911 = vsel %vm360, %v894, 0
        %913 = vmatpush.msra.mxu0 0.0
        %914 = vmatpush.msra.mxu0 0.0
        %915 = vmatpush.msra.mxu0 0.0
        %916 = vmatpush.msra.mxu0 0.0
        %917 = vmatpush.msra.mxu0 0.0
        %918 = vmatpush.msra.mxu0 0.0
        %919 = vmatpush.msra.mxu0 0.0
        %920 = vmatpush.msra.mxu0 0.0
        %921 = vmatpush.msra.mxu0 0.0
        %922 = vmatpush.msra.mxu0 0.0
        %923 = vmatpush.msra.mxu0 0.0
        %924 = vmatpush.msra.mxu0 0.0
        %925 = vmatpush.msra.mxu0 0.0
        %926 = vmatpush.msra.mxu0 0.0
        %927 = vmatpush.msra.mxu0 %v904
        %928 = vmatpush.msra.mxu0 %v902
        %929 = vmatmul.f32.gmra.mxu0 %v908
        %v930 = vpop.f32.mrf.mxu0
        %v931 = vadd.f32 0.0, %v930
        %932 = vmatmul.f32.gmra.mxu0 %v911
        %v933 = vpop.f32.mrf.mxu0
        %v934 = vadd.f32 0.0, %v933
        %935 = vdwg.mxu0
        %v936 = vrcp.pop %v897
        %v937 = vrcp.pop %v900
        %v938 = vmul.f32 %v931, %v936
        %v939 = vmul.f32 %v934, %v937
        %942 = vrot.lane.b32.xlu0 %v938, 40
        %v943 = vpop.permute.xlu0 %942
        %944 = vrot.lane.b32.xlu0 %v939, 40
        %v945 = vpop.permute.xlu0 %944
        %vm948 = vcmask 392512
        %949 = vst.msk [vmem:[#allocation2] sm:$0xff] %vm948, %v943
        %950 = vst.msk [vmem:[#allocation2 + $0x8] sm:$0xff] %vm948, %v945
        %951 = vrot.lane.b32.xlu0 %v294, 80
        %v952 = vpop.permute.xlu0 %951
        %953 = vrot.lane.b32.xlu0 %v297, 80
        %v954 = vpop.permute.xlu0 %953
        %955 = vrot.lane.b32.xlu0 %v294, 16
        %v956 = vpop.permute.xlu0 %955
        %957 = vrot.lane.b32.xlu0 %v297, 16
        %v958 = vpop.permute.xlu0 %957
        %v959 = vsel %vm328, %v952, 0
        %v961 = vsel %vm328, %v954, 0
        %v963 = vsel %vm328, %v956, 0
        %v965 = vsel %vm328, %v958, 0
        %967 = vmatpush.xpose.msra.mxu0 0.0
        %968 = vmatpush.xpose.msra.mxu0 0.0
        %969 = vmatpush.xpose.msra.mxu0 0.0
        %970 = vmatpush.xpose.msra.mxu0 0.0
        %971 = vmatpush.xpose.msra.mxu0 0.0
        %972 = vmatpush.xpose.msra.mxu0 0.0
        %973 = vmatpush.xpose.msra.mxu0 0.0
        %974 = vmatpush.xpose.msra.mxu0 0.0
        %975 = vmatpush.xpose.msra.mxu0 0.0
        %976 = vmatpush.xpose.msra.mxu0 0.0
        %977 = vmatpush.xpose.msra.mxu0 0.0
        %978 = vmatpush.xpose.msra.mxu0 0.0
        %979 = vmatpush.xpose.msra.mxu0 0.0
        %980 = vmatpush.xpose.msra.mxu0 0.0
        %981 = vmatpush.xpose.msra.mxu0 %v965
        %982 = vmatpush.xpose.msra.mxu0 %v963
        %983 = vmatmul.f32.gmra.mxu0 %v959
        %v984 = vpop.f32.mrf.mxu0
        %v985 = vadd.f32 0.0, %v984
        %986 = vmatmul.f32.gmra.mxu0 %v961
        %v987 = vpop.f32.mrf.mxu0
        %v988 = vadd.f32 0.0, %v987
        %989 = vdwg.mxu0
        %v990 = vsel %vm360, %v985, -inf
        %991 = vmax.xlane.f32.xlu0 %v990
        %v992 = vpop.xlane.xlu0 %991
        %v993 = vsel %vm360, %v988, -inf
        %994 = vmax.xlane.f32.xlu0 %v993
        %v995 = vpop.xlane.xlu0 %994
        %v996 = vsub.f32 %v985, %v992
        %v997 = vsub.f32 %v988, %v995
        %v998 = vmul.f32 %v996, 1.442695
        %v999 = vpow.pop %v998
        %v1000 = vmul.f32 %v997, 1.442695
        %v1001 = vpow.pop %v1000
        %v1002 = vsel %vm360, %v999, 0.0
        %1003 = vadd.xlane.f32.xlu0 %v1002
        %v1004 = vpop.xlane.xlu0 %1003
        %v1005 = vsel %vm360, %v1001, 0.0
        %1006 = vadd.xlane.f32.xlu0 %v1005
        %v1007 = vpop.xlane.xlu0 %1006
        %1008 = vrot.lane.b32.xlu0 %v317, 80
        %v1009 = vpop.permute.xlu0 %1008
        %1010 = vrot.lane.b32.xlu0 %v320, 80
        %v1011 = vpop.permute.xlu0 %1010
        %v1015 = vsel %vm360, %v999, 0
        %v1018 = vsel %vm360, %v1001, 0
        %1020 = vmatpush.msra.mxu0 0.0
        %1021 = vmatpush.msra.mxu0 0.0
        %1022 = vmatpush.msra.mxu0 0.0
        %1023 = vmatpush.msra.mxu0 0.0
        %1024 = vmatpush.msra.mxu0 0.0
        %1025 = vmatpush.msra.mxu0 0.0
        %1026 = vmatpush.msra.mxu0 0.0
        %1027 = vmatpush.msra.mxu0 0.0
        %1028 = vmatpush.msra.mxu0 0.0
        %1029 = vmatpush.msra.mxu0 0.0
        %1030 = vmatpush.msra.mxu0 0.0
        %1031 = vmatpush.msra.mxu0 0.0
        %1032 = vmatpush.msra.mxu0 0.0
        %1033 = vmatpush.msra.mxu0 0.0
        %1034 = vmatpush.msra.mxu0 %v1011
        %1035 = vmatpush.msra.mxu0 %v1009
        %1036 = vmatmul.f32.gmra.mxu0 %v1015
        %v1037 = vpop.f32.mrf.mxu0
        %v1038 = vadd.f32 0.0, %v1037
        %1039 = vmatmul.f32.gmra.mxu0 %v1018
        %v1040 = vpop.f32.mrf.mxu0
        %v1041 = vadd.f32 0.0, %v1040
        %1042 = vdwg.mxu0
        %v1043 = vrcp.pop %v1004
        %v1044 = vrcp.pop %v1007
        %v1045 = vmul.f32 %v1038, %v1043
        %v1046 = vmul.f32 %v1041, %v1044
        %1049 = vrot.lane.b32.xlu0 %v1045, 48
        %v1050 = vpop.permute.xlu0 %1049
        %1051 = vrot.lane.b32.xlu0 %v1046, 48
        %v1052 = vpop.permute.xlu0 %1051
        %vm1055 = vcmask 458112
        %1056 = vst.msk [vmem:[#allocation2] sm:$0xff] %vm1055, %v1050
        %1057 = vst.msk [vmem:[#allocation2 + $0x8] sm:$0xff] %vm1055, %v1052
        %1058 = vrot.lane.b32.xlu0 %v294, 72
        %v1059 = vpop.permute.xlu0 %1058
        %1060 = vrot.lane.b32.xlu0 %v297, 72
        %v1061 = vpop.permute.xlu0 %1060
        %1062 = vrot.lane.b32.xlu0 %v294, 8
        %v1063 = vpop.permute.xlu0 %1062
        %1064 = vrot.lane.b32.xlu0 %v297, 8
        %v1065 = vpop.permute.xlu0 %1064
        %v1066 = vsel %vm328, %v1059, 0
        %v1068 = vsel %vm328, %v1061, 0
        %v1070 = vsel %vm328, %v1063, 0
        %v1072 = vsel %vm328, %v1065, 0
        %1074 = vmatpush.xpose.msra.mxu0 0.0
        %1075 = vmatpush.xpose.msra.mxu0 0.0
        %1076 = vmatpush.xpose.msra.mxu0 0.0
        %1077 = vmatpush.xpose.msra.mxu0 0.0
        %1078 = vmatpush.xpose.msra.mxu0 0.0
        %1079 = vmatpush.xpose.msra.mxu0 0.0
        %1080 = vmatpush.xpose.msra.mxu0 0.0
        %1081 = vmatpush.xpose.msra.mxu0 0.0
        %1082 = vmatpush.xpose.msra.mxu0 0.0
        %1083 = vmatpush.xpose.msra.mxu0 0.0
        %1084 = vmatpush.xpose.msra.mxu0 0.0
        %1085 = vmatpush.xpose.msra.mxu0 0.0
        %1086 = vmatpush.xpose.msra.mxu0 0.0
        %1087 = vmatpush.xpose.msra.mxu0 0.0
        %1088 = vmatpush.xpose.msra.mxu0 %v1072
        %1089 = vmatpush.xpose.msra.mxu0 %v1070
        %1090 = vmatmul.f32.gmra.mxu0 %v1066
        %v1091 = vpop.f32.mrf.mxu0
        %v1092 = vadd.f32 0.0, %v1091
        %1093 = vmatmul.f32.gmra.mxu0 %v1068
        %v1094 = vpop.f32.mrf.mxu0
        %v1095 = vadd.f32 0.0, %v1094
        %1096 = vdwg.mxu0
        %v1097 = vsel %vm360, %v1092, -inf
        %1098 = vmax.xlane.f32.xlu0 %v1097
        %v1099 = vpop.xlane.xlu0 %1098
        %v1100 = vsel %vm360, %v1095, -inf
        %1101 = vmax.xlane.f32.xlu0 %v1100
        %v1102 = vpop.xlane.xlu0 %1101
        %v1103 = vsub.f32 %v1092, %v1099
        %v1104 = vsub.f32 %v1095, %v1102
        %v1105 = vmul.f32 %v1103, 1.442695
        %v1106 = vpow.pop %v1105
        %v1107 = vmul.f32 %v1104, 1.442695
        %v1108 = vpow.pop %v1107
        %v1109 = vsel %vm360, %v1106, 0.0
        %1110 = vadd.xlane.f32.xlu0 %v1109
        %v1111 = vpop.xlane.xlu0 %1110
        %v1112 = vsel %vm360, %v1108, 0.0
        %1113 = vadd.xlane.f32.xlu0 %v1112
        %v1114 = vpop.xlane.xlu0 %1113
        %1115 = vrot.lane.b32.xlu0 %v317, 72
        %v1116 = vpop.permute.xlu0 %1115
        %1117 = vrot.lane.b32.xlu0 %v320, 72
        %v1118 = vpop.permute.xlu0 %1117
        %v1122 = vsel %vm360, %v1106, 0
        %v1125 = vsel %vm360, %v1108, 0
        %1127 = vmatpush.msra.mxu0 0.0
        %1128 = vmatpush.msra.mxu0 0.0
        %1129 = vmatpush.msra.mxu0 0.0
        %1130 = vmatpush.msra.mxu0 0.0
        %1131 = vmatpush.msra.mxu0 0.0
        %1132 = vmatpush.msra.mxu0 0.0
        %1133 = vmatpush.msra.mxu0 0.0
        %1134 = vmatpush.msra.mxu0 0.0
        %1135 = vmatpush.msra.mxu0 0.0
        %1136 = vmatpush.msra.mxu0 0.0
        %1137 = vmatpush.msra.mxu0 0.0
        %1138 = vmatpush.msra.mxu0 0.0
        %1139 = vmatpush.msra.mxu0 0.0
        %1140 = vmatpush.msra.mxu0 0.0
        %1141 = vmatpush.msra.mxu0 %v1118
        %1142 = vmatpush.msra.mxu0 %v1116
        %1143 = vmatmul.f32.gmra.mxu0 %v1122
        %v1144 = vpop.f32.mrf.mxu0
        %v1145 = vadd.f32 0.0, %v1144
        %1146 = vmatmul.f32.gmra.mxu0 %v1125
        %v1147 = vpop.f32.mrf.mxu0
        %v1148 = vadd.f32 0.0, %v1147
        %1149 = vdwg.mxu0
        %v1150 = vrcp.pop %v1111
        %v1151 = vrcp.pop %v1114
        %v1152 = vmul.f32 %v1145, %v1150
        %v1153 = vmul.f32 %v1148, %v1151
        %1156 = vrot.lane.b32.xlu0 %v1152, 56
        %v1157 = vpop.permute.xlu0 %1156
        %1158 = vrot.lane.b32.xlu0 %v1153, 56
        %v1159 = vpop.permute.xlu0 %1158
        %vm1162 = vcmask 523712
        %1163 = vst.msk [vmem:[#allocation2] sm:$0xff] %vm1162, %v1157
        %1164 = vst.msk [vmem:[#allocation2 + $0x8] sm:$0xff] %vm1162, %v1159
        %v1165 = vld [vmem:[#allocation2] sm:$0xff]
        %v1166 = vld [vmem:[#allocation2 + $0x8] sm:$0xff]
        %v1167 = vld [vmem:[#allocation8] sm:$0xff]
        %v1168 = vld [vmem:[#allocation8 + $0x8] sm:$0xff]
        %v1169 = vld [vmem:[#allocation8 + $0x10] sm:$0xff]
        %v1170 = vld [vmem:[#allocation8 + $0x18] sm:$0xff]
        %v1171 = vld [vmem:[#allocation8 + $0x20] sm:$0xff]
        %v1172 = vld [vmem:[#allocation8 + $0x28] sm:$0xff]
        %v1173 = vld [vmem:[#allocation8 + $0x30] sm:$0xff]
        %v1174 = vld [vmem:[#allocation8 + $0x38] sm:$0xff]
        %v1175 = vld [vmem:[%s3] sm:$0x1]
        %v1177 = vperm.slane %v1175, 0
        %v1180 = vsel %vm269, %v1165, 0
        %v1183 = vsel %vm269, %v1166, 0
        %1185 = vmatpush.msra.mxu0 0.0
        %1186 = vmatpush.msra.mxu0 0.0
        %1187 = vmatpush.msra.mxu0 0.0
        %1188 = vmatpush.msra.mxu0 0.0
        %1189 = vmatpush.msra.mxu0 0.0
        %1190 = vmatpush.msra.mxu0 0.0
        %1191 = vmatpush.msra.mxu0 0.0
        %1192 = vmatpush.msra.mxu0 0.0
        %1193 = vmatpush.msra.mxu0 %v1174
        %1194 = vmatpush.msra.mxu0 %v1173
        %1195 = vmatpush.msra.mxu0 %v1172
        %1196 = vmatpush.msra.mxu0 %v1171
        %1197 = vmatpush.msra.mxu0 %v1170
        %1198 = vmatpush.msra.mxu0 %v1169
        %1199 = vmatpush.msra.mxu0 %v1168
        %1200 = vmatpush.msra.mxu0 %v1167
        %1201 = vmatmul.f32.gmra.mxu0 %v1180
        %v1202 = vpop.f32.mrf.mxu0
        %v1203 = vadd.f32 %v1177, %v1202
        %1204 = vmatmul.f32.gmra.mxu0 %v1183
        %v1205 = vpop.f32.mrf.mxu0
        %v1206 = vadd.f32 %v1177, %v1205
        %1207 = vdwg.mxu0
        %1208 = vst.msk [vmem:[%s250] sm:$0xff] %vm269, %v1203
        %1209 = vst.msk [vmem:[%s250 + $0x8] sm:$0xff] %vm269, %v1206
        %s1210 = sand.u32 %s119, 1
        %s1211 = scalar_lea.sflag [#allocation5], %s1210
        %s1212 = sand.u32 %s119, 1
        %s1213 = smul.addr %s1212, 16
        %s1214 = scalar_lea.vmem [#allocation9], %s1213
        // Predicated region
        $region49: #{tpu_custom_call.1} parent=35 // pred_check
          %p1215 = pneg %p129
        $region50: #{tpu_custom_call.1} parent=35 // pred_check_branch
          %1217 = sbr.rel (%p1215) target = $region52
        $region51: #{tpu_custom_call.1} parent=35 // pred_region
          %1219 = vsyncadd %s1211, 0
          %s1220 = smul.addr %s22, 2
          %s1221 = smul.addr %s1220, 8
          %s1222 = scalar_lea.hbm %s4, %s1221
          %s1223 = sshll.u32 %s1214, 4
          %s1224 = int_to_ptr.vmem [resolvable:$true] %s1223
          %s1225 = sshll.u32 %s1222, 4
          %s1226 = int_to_ptr.hbm [resolvable:$true] %s1225
          %1231 = dma.vmem_to_hbm [thread:$0]  %s1224, 256, %s1226, %s1211, 128, 128, 8
        $region52: #{tpu_custom_call.1} parent=35 // pred_fallthru
          _
      $region36: #{tpu_custom_call.1} parent=5 // pred_fallthru
        _
      %p1232 = scmp.le.s32.totalorder 2, %s17
      // Predicated region
      $region53: #{tpu_custom_call.1} parent=5 // pred_check
        %p1233 = pneg %p1232
      $region54: #{tpu_custom_call.1} parent=5 // pred_check_branch
        %1235 = sbr.rel (%p1233) target = $region56
      $region55: #{tpu_custom_call.1} parent=5 // pred_region
        %s1236 = ssub.s32 %s17, 2
        // Predicated region
        $region57: #{tpu_custom_call.1} parent=55 // pred_check
          %p1237 = pneg %p135
        $region58: #{tpu_custom_call.1} parent=55 // pred_check_branch
          %1239 = sbr.rel (%p1237) target = $region60
        $region59: #{tpu_custom_call.1} parent=55 // pred_region
          %s1240 = sand.u32 %s120, 1
          %s1241 = scalar_lea.sflag [#allocation5], %s1240
          %s1242 = sand.u32 %s120, 1
          %s1243 = smul.addr %s1242, 16
          %s1244 = scalar_lea.vmem [#allocation9], %s1243
          %1246 = dma.done %s1241, 256
        $region60: #{tpu_custom_call.1} parent=55 // pred_fallthru
          _
      $region56: #{tpu_custom_call.1} parent=5 // pred_fallthru
        _
    $region6: #{tpu_custom_call.1} parent=1 // loop_footer
      %s21 = sadd.s32 1, %s17
    $region7: #{tpu_custom_call.1} parent=1 // loop_footer_branch
      %16 = sbr.rel target = $region3
    $region8: #{tpu_custom_call.1} parent=1 // loop_exit
      _
    %1247 = vsyncpa [#allocation4], 1
    %s1248 = scalar_lea.sflag [#allocation4], 1
    %1249 = vsyncpa %s1248, 1
    %1250 = vsyncpa [#allocation7], 1
    %1251 = vsyncpa [#allocation5], 1
    %s1252 = scalar_lea.sflag [#allocation5], 1
    %1253 = vsyncpa %s1252, 1

</llo_original>
